<compile_context>
chip_gen: v6e
topology: v6e:2x2x1
jax: 0.10.0
libtpu: 0.0.40
codegen_flags: <defaults>
</compile_context>

<pallas_src>
import jax
import jax.numpy as jnp
from jax import lax
from jax.experimental import pallas as pl
from jax.experimental.pallas import tpu as pltpu

# ---------------------------------------------------------------------------
# Small, lane-friendly stand-ins for the original Config dims.
# ---------------------------------------------------------------------------
B           = 2      # example (real) batch
TB          = 16     # batch tile: multiple of 16 (bf16 vreg = [16,128])
B_PAD       = 32     # padded batch = 2 tiles -> grid=(2,)
SEQ         = 8      # text sequence length
VOCAB       = 64     # toy vocab for the BERT substitute
VOCAB_PAD   = 128    # embedding rows padded to 128 (lane-dense one-hot dot)
TEXT_EMB    = 128    # Config.TEXT_EMBEDDING_DIM   (orig 768)
VIDEO_EMB   = 256    # Config.VIDEO_EMBEDDING_DIM  (orig 2048)
AUDIO_EMB   = 128    # Config.AUDIO_EMBEDDING_DIM  (orig 1024)
FUSION_DIM  = 128    # Config.FUSION_DIM           (orig 512)
NUM_CLASSES = 8      # Config.NUM_CLASSES
FRAMES      = 4      # Config.FRAMES_PER_VIDEO     (orig 30)
FRAME_FEAT  = 32     # per-frame raw feature dim   (orig 1000)
VIDEO_IN    = FRAMES * FRAME_FEAT    # 128
AUDIO_IN    = 128
VIDEO_H1    = 128    # video fc1 hidden            (orig 1024)
AUDIO_H1    = 64     # audio fc1 hidden            (orig 512)
TOTAL_DIM   = TEXT_EMB + VIDEO_EMB + AUDIO_EMB     # 512
F2          = FUSION_DIM // 2                      # 64

# lane-padded sizes (sub-128 dims zero-padded to 128)
A_H1_PAD = 128
F2_PAD   = 128
NC_PAD   = 128

# ---------------------------------------------------------------------------
# Packed-parameter layout.
# w128: (N128_ROWS, 128) bf16 — all 128-lane weights stacked along rows.
# w256: (128, 256)       bf16 — the single 256-lane weight (video fc2).
# bias: (9, 256)         f32  — one bias per row, zero-padded to 256 lanes.
# embed: (128, 128)      bf16 — vocab rows zero-padded 64 -> 128.
# ---------------------------------------------------------------------------
O_POOL = 0
O_TFC  = O_POOL + TEXT_EMB     # 128
O_V1   = O_TFC + TEXT_EMB      # 256
O_A1   = O_V1 + VIDEO_IN       # 384
O_A2   = O_A1 + AUDIO_IN       # 512
O_F1   = O_A2 + A_H1_PAD       # 640
O_F2   = O_F1 + TOTAL_DIM      # 1152
O_F3   = O_F2 + FUSION_DIM     # 1280
N128_ROWS = O_F3 + F2_PAD      # 1408

BI_POOL, BI_TFC, BI_V1, BI_V2, BI_A1, BI_A2, BI_F1, BI_F2, BI_F3 = range(9)
NUM_BIASES = 9


# ---------------------------------------------------------------------------
# Pallas kernel: fused text pre-pool + pooler + every Linear/ReLU in the head.
# One batch tile (TB rows) per grid step; all parameters VMEM-resident.
# ---------------------------------------------------------------------------
def fusion_kernel(ids_ref, mask_ref, video_ref, audio_ref,
                  embed_ref, w128_ref, w256_ref, bias_ref, out_ref):
    f32 = jnp.float32
    relu = lambda x: jnp.maximum(x, 0.0)
    # bf16 operands into the MXU, f32 accumulation; elementwise stays f32.
    dot = lambda a, w: jnp.dot(a.astype(jnp.bfloat16), w,
                               preferred_element_type=f32)
    wsl = lambda o, rows: w128_ref[o:o + rows, :]        # static row slice
    bsl = lambda i, n=128: bias_ref[i:i + 1, :n]         # static bias row

    # ----- fused BERT substitute: one-hot gather + attention-masked mean -----
    ids = ids_ref[...]                                   # (TB, SEQ) int32
    mask = mask_ref[...]                                 # (TB, SEQ) f32 in {0,1}
    vocab_iota = lax.broadcasted_iota(jnp.int32, (TB, VOCAB_PAD), 1)
    onehot = jnp.zeros((TB, VOCAB_PAD), f32)
    for s in range(SEQ):                                 # SEQ=8 static unroll, VPU
        onehot = onehot + jnp.where(ids[:, s:s + 1] == vocab_iota,
                                    mask[:, s:s + 1], 0.0)
    inv_cnt = 1.0 / jnp.maximum(jnp.sum(mask, axis=1, keepdims=True), 1.0)
    text_pre = dot(onehot, embed_ref[...]) * inv_cnt     # (TB, TEXT_EMB) f32

    # ----- TextEncoder (the spec module) -----
    # BERT-pooler substitute folded in: tanh lowers to the EUP slot.
    pooled = jnp.tanh(dot(text_pre, wsl(O_POOL, TEXT_EMB)) + bsl(BI_POOL))
    # Dropout(0.3) == identity in eval; then fc + ReLU.
    t = relu(dot(pooled, wsl(O_TFC, TEXT_EMB)) + bsl(BI_TFC))

    # ----- VideoEncoder: fc1 -> ReLU -> fc2 -> ReLU -----
    v = relu(dot(video_ref[...], wsl(O_V1, VIDEO_IN)) + bsl(BI_V1))
    v = relu(dot(v, w256_ref[...]) + bsl(BI_V2, VIDEO_EMB))

    # ----- AudioEncoder (hidden 64 zero-padded to 128 lanes) -----
    a = relu(dot(audio_ref[...], wsl(O_A1, AUDIO_IN)) + bsl(BI_A1))
    a = relu(dot(a, wsl(O_A2, A_H1_PAD)) + bsl(BI_A2))

    # ----- Fusion fc1: single K=512 dot against the contiguous w128 slab -----
    # (one small lane concat in bf16; fewer/longer MXU pipelines on v5e/v6e)
    tva = jnp.concatenate([t.astype(jnp.bfloat16),
                           v.astype(jnp.bfloat16),
                           a.astype(jnp.bfloat16)], axis=-1)   # (TB, 512)
    h = relu(jnp.dot(tva, wsl(O_F1, TOTAL_DIM), preferred_element_type=f32)
             + bsl(BI_F1))

    # ----- Fusion fc2 + classifier head (lane dims padded to 128) -----
    h = relu(dot(h, wsl(O_F2, FUSION_DIM)) + bsl(BI_F2))
    out_ref[...] = dot(h, wsl(O_F3, F2_PAD)) + bsl(BI_F3)


def multimodal_fusion_pallas(ids, mask, video, audio, params):
    """All batch inputs pre-padded to (B_PAD, ·); returns padded (B_PAD, NC_PAD)."""
    n_tiles = ids.shape[0] // TB
    batch_spec = lambda lane: pl.BlockSpec((TB, lane), lambda i: (i, 0))
    const_spec = lambda shape: pl.BlockSpec(shape, lambda i: (0, 0))
    return pl.pallas_call(
        fusion_kernel,
        out_shape=jax.ShapeDtypeStruct((ids.shape[0], NC_PAD), jnp.float32),
        grid=(n_tiles,),
        in_specs=[
            batch_spec(SEQ),                    # input_ids      (per tile)
            batch_spec(SEQ),                    # attention mask (per tile)
            batch_spec(VIDEO_IN),               # video features (per tile)
            batch_spec(AUDIO_IN),               # audio features (per tile)
            const_spec((VOCAB_PAD, TEXT_EMB)),  # embedding  — VMEM-resident
            const_spec((N128_ROWS, 128)),       # w128 slab  — VMEM-resident
            const_spec((128, VIDEO_EMB)),       # w256       — VMEM-resident
            const_spec((NUM_BIASES, 256)),      # bias slab  — VMEM-resident
        ],
        out_specs=pl.BlockSpec((TB, NC_PAD), lambda i: (i, 0)),
        compiler_params=pltpu.CompilerParams(
            dimension_semantics=("parallel",)),   # v7x: split tiles across 2 TCs
        # No vmem_limit override: total parameter footprint < 1 MiB.
    )(ids, mask, video, audio,
      params["embed"], params["w128"], params["w256"], params["bias"])


# ---------------------------------------------------------------------------
# Deterministic parameter init + packing ((in, out) layout, bf16 weights).
# ---------------------------------------------------------------------------
def _linear(key, fan_in, fan_out):
    kw, kb = jax.random.split(key)
    scale = 1.0 / jnp.sqrt(jnp.float32(fan_in))
    w = jax.random.uniform(kw, (fan_in, fan_out), jnp.float32, -scale, scale)
    bvec = jax.random.uniform(kb, (fan_out,), jnp.float32, -scale, scale)
    return w, bvec


def init_params(key):
    ks = jax.random.split(key, 10)
    w_pool, b_pool = _linear(ks[0], TEXT_EMB, TEXT_EMB)     # BERT pooler substitute
    w_tfc,  b_tfc  = _linear(ks[1], TEXT_EMB, TEXT_EMB)     # TextEncoder.fc
    w_v1,   b_v1   = _linear(ks[2], VIDEO_IN, VIDEO_H1)
    w_v2,   b_v2   = _linear(ks[3], VIDEO_H1, VIDEO_EMB)
    w_a1,   b_a1   = _linear(ks[4], AUDIO_IN, AUDIO_H1)
    w_a2,   b_a2   = _linear(ks[5], AUDIO_H1, AUDIO_EMB)
    w_f1,   b_f1   = _linear(ks[6], TOTAL_DIM, FUSION_DIM)
    w_f2,   b_f2   = _linear(ks[7], FUSION_DIM, F2)
    w_f3,   b_f3   = _linear(ks[8], F2, NUM_CLASSES)
    embed = jax.random.normal(ks[9], (VOCAB, TEXT_EMB), jnp.float32) * 0.02

    # zero-pad sub-128 lane dims so every matmul runs lane-dense
    padc = lambda w, n: jnp.pad(w, ((0, 0), (0, n - w.shape[1])))
    padr = lambda w, n: jnp.pad(w, ((0, n - w.shape[0]), (0, 0)))
    padv = lambda v, n: jnp.pad(v, (0, n - v.shape[0]))

    w_a1p = padc(w_a1, A_H1_PAD)
    b_a1p = padv(b_a1, A_H1_PAD)
    w_a2p = padr(w_a2, A_H1_PAD)
    w_f2p = padc(w_f2, F2_PAD)
    b_f2p = padv(b_f2, F2_PAD)
    w_f3p = padc(padr(w_f3, F2_PAD), NC_PAD)
    b_f3p = padv(b_f3, NC_PAD)

    w128 = jnp.concatenate(
        [w_pool, w_tfc, w_v1, w_a1p, w_a2p, w_f1, w_f2p, w_f3p], axis=0
    ).astype(jnp.bfloat16)
    assert w128.shape == (N128_ROWS, 128)
    w256 = w_v2.astype(jnp.bfloat16)

    bias = jnp.zeros((NUM_BIASES, 256), jnp.float32)
    for i, vec in ((BI_POOL, b_pool), (BI_TFC, b_tfc), (BI_V1, b_v1),
                   (BI_V2, b_v2), (BI_A1, b_a1p), (BI_A2, b_a2),
                   (BI_F1, b_f1), (BI_F2, b_f2p), (BI_F3, b_f3p)):
        bias = bias.at[i, :vec.shape[0]].set(vec)

    embed_pad = padr(embed, VOCAB_PAD).astype(jnp.bfloat16)

    return {"embed": embed_pad, "w128": w128, "w256": w256, "bias": bias}


# ---------------------------------------------------------------------------
# Pure-JAX reference mirroring the kernel math exactly (same packed bf16
# weights, same one-hot pre-pool, same bf16 operand casts, f32 accumulation).
# ---------------------------------------------------------------------------
def reference_forward(ids, mask, video, audio, params):
    w128, w256 = params["w128"], params["w256"]
    bias, embed = params["bias"], params["embed"]
    relu = lambda x: jnp.maximum(x, 0.0)
    dot = lambda a, w: jnp.dot(a.astype(jnp.bfloat16), w,
                               preferred_element_type=jnp.float32)
    wsl = lambda o, rows: w128[o:o + rows, :]
    bsl = lambda i, n=128: bias[i:i + 1, :n]

    nb = ids.shape[0]
    vocab_iota = lax.broadcasted_iota(jnp.int32, (nb, VOCAB_PAD), 1)
    onehot = jnp.zeros((nb, VOCAB_PAD), jnp.float32)
    for s in range(SEQ):
        onehot = onehot + jnp.where(ids[:, s:s + 1] == vocab_iota,
                                    mask[:, s:s + 1], 0.0)
    inv_cnt = 1.0 / jnp.maximum(jnp.sum(mask, axis=1, keepdims=True), 1.0)
    text_pre = dot(onehot, embed) * inv_cnt

    pooled = jnp.tanh(dot(text_pre, wsl(O_POOL, TEXT_EMB)) + bsl(BI_POOL))
    t = relu(dot(pooled, wsl(O_TFC, TEXT_EMB)) + bsl(BI_TFC))
    v = relu(dot(video, wsl(O_V1, VIDEO_IN)) + bsl(BI_V1))
    v = relu(dot(v, w256) + bsl(BI_V2, VIDEO_EMB))
    a = relu(dot(audio, wsl(O_A1, AUDIO_IN)) + bsl(BI_A1))
    a = relu(dot(a, wsl(O_A2, A_H1_PAD)) + bsl(BI_A2))
    tva = jnp.concatenate([t.astype(jnp.bfloat16), v.astype(jnp.bfloat16),
                           a.astype(jnp.bfloat16)], axis=-1)
    h = relu(jnp.dot(tva, wsl(O_F1, TOTAL_DIM),
                     preferred_element_type=jnp.float32) + bsl(BI_F1))
    h = relu(dot(h, wsl(O_F2, FUSION_DIM)) + bsl(BI_F2))
    return dot(h, wsl(O_F3, F2_PAD)) + bsl(BI_F3)


if __name__ == "__main__":
    key = jax.random.PRNGKey(0)
    k_param, k_ids, k_vid, k_aud = jax.random.split(key, 4)

    params = init_params(k_param)

    text_input_ids = jax.random.randint(k_ids, (B, SEQ), 0, VOCAB, dtype=jnp.int32)
    text_attention_mask = jnp.ones((B, SEQ), dtype=jnp.int32).at[1, SEQ - 2:].set(0)
    video_features = jax.random.normal(k_vid, (B, VIDEO_IN), jnp.float32)
    audio_features = jax.random.normal(k_aud, (B, AUDIO_IN), jnp.float32)

    # One-time batch padding (B -> B_PAD rows), outside the kernel hot path.
    pad_rows = lambda x: jnp.pad(x, ((0, B_PAD - x.shape[0]), (0, 0)))
    ids_p   = pad_rows(text_input_ids)
    mask_p  = pad_rows(text_attention_mask.astype(jnp.float32))
    video_p = pad_rows(video_features)
    audio_p = pad_rows(audio_features)

    logits_pad = multimodal_fusion_pallas(ids_p, mask_p, video_p, audio_p, params)
    logits_pad = jax.block_until_ready(logits_pad)
    logits = logits_pad[:B, :NUM_CLASSES]

    ref = reference_forward(ids_p, mask_p, video_p, audio_p, params)[:B, :NUM_CLASSES]

    assert logits.shape == (B, NUM_CLASSES)
    # bf16 MXU operands in both paths -> small residual tolerance.
    assert jnp.allclose(logits, ref, atol=1e-2, rtol=1e-2), \
        "Pallas kernel mismatch vs reference"

    print("KERNEL_OK")
</pallas_src>

<mosaic_0001>
module attributes {stable_mosaic.version = 11 : i64} {
  func.func @fusion_kernel(%arg0: i32, %arg1: memref<16x8xi32, #tpu.memory_space<vmem>>, %arg2: memref<16x8xf32, #tpu.memory_space<vmem>>, %arg3: memref<16x128xf32, #tpu.memory_space<vmem>>, %arg4: memref<16x128xf32, #tpu.memory_space<vmem>>, %arg5: memref<128x128xbf16, #tpu.memory_space<vmem>>, %arg6: memref<1408x128xbf16, #tpu.memory_space<vmem>>, %arg7: memref<128x256xbf16, #tpu.memory_space<vmem>>, %arg8: memref<9x256xf32, #tpu.memory_space<vmem>>, %arg9: memref<16x128xf32, #tpu.memory_space<vmem>>) attributes {dimension_semantics = [#tpu.dimension_semantics<parallel>], iteration_bounds = array<i64: 2>, scalar_prefetch = 0 : i64, scratch_operands = 0 : i64, tpu.core_type = #tpu.core_type<tc>, window_params = [{transform_indices = @transform_0, window_bounds = array<i64: 16, 8>}, {transform_indices = @transform_1, window_bounds = array<i64: 16, 8>}, {transform_indices = @transform_2, window_bounds = array<i64: 16, 128>}, {transform_indices = @transform_3, window_bounds = array<i64: 16, 128>}, {pipeline_mode = #tpu.pipeline_mode<synchronous>, transform_indices = @transform_4, window_bounds = array<i64: 128, 128>}, {pipeline_mode = #tpu.pipeline_mode<synchronous>, transform_indices = @transform_5, window_bounds = array<i64: 1408, 128>}, {pipeline_mode = #tpu.pipeline_mode<synchronous>, transform_indices = @transform_6, window_bounds = array<i64: 128, 256>}, {pipeline_mode = #tpu.pipeline_mode<synchronous>, transform_indices = @transform_7, window_bounds = array<i64: 9, 256>}, {transform_indices = @transform_8, window_bounds = array<i64: 16, 128>}]} {
    %c0 = arith.constant 0 : index
    %c0_0 = arith.constant 0 : index
    %0 = vector.load %arg1[%c0, %c0_0] : memref<16x8xi32, #tpu.memory_space<vmem>>, vector<16x8xi32>
    %c0_1 = arith.constant 0 : index
    %c0_2 = arith.constant 0 : index
    %1 = vector.load %arg2[%c0_1, %c0_2] : memref<16x8xf32, #tpu.memory_space<vmem>>, vector<16x8xf32>
    %2 = tpu.iota {dimensions = array<i32: 1>} : vector<16x128xi32>
    %cst = arith.constant 0.000000e+00 : f32
    %3 = vector.broadcast %cst : f32 to vector<16x128xf32>
    %4 = vector.extract_strided_slice %0 {offsets = [0, 0], sizes = [16, 1], strides = [1, 1]} : vector<16x8xi32> to vector<16x1xi32>
    %5 = vector.broadcast %4 : vector<16x1xi32> to vector<16x128xi32>
    %6 = arith.cmpi eq, %5, %2 : vector<16x128xi32>
    %7 = vector.extract_strided_slice %1 {offsets = [0, 0], sizes = [16, 1], strides = [1, 1]} : vector<16x8xf32> to vector<16x1xf32>
    %cst_3 = arith.constant 0.000000e+00 : f32
    %8 = vector.shape_cast %7 : vector<16x1xf32> to vector<16x1xf32>
    %9 = vector.broadcast %8 : vector<16x1xf32> to vector<16x128xf32>
    %10 = vector.broadcast %cst_3 : f32 to vector<16x128xf32>
    %11 = arith.select %6, %9, %10 : vector<16x128xi1>, vector<16x128xf32>
    %12 = arith.addf %3, %11 : vector<16x128xf32>
    %13 = vector.extract_strided_slice %0 {offsets = [0, 1], sizes = [16, 1], strides = [1, 1]} : vector<16x8xi32> to vector<16x1xi32>
    %14 = vector.broadcast %13 : vector<16x1xi32> to vector<16x128xi32>
    %15 = arith.cmpi eq, %14, %2 : vector<16x128xi32>
    %16 = vector.extract_strided_slice %1 {offsets = [0, 1], sizes = [16, 1], strides = [1, 1]} : vector<16x8xf32> to vector<16x1xf32>
    %cst_4 = arith.constant 0.000000e+00 : f32
    %17 = vector.shape_cast %16 : vector<16x1xf32> to vector<16x1xf32>
    %18 = vector.broadcast %17 : vector<16x1xf32> to vector<16x128xf32>
    %19 = vector.broadcast %cst_4 : f32 to vector<16x128xf32>
    %20 = arith.select %15, %18, %19 : vector<16x128xi1>, vector<16x128xf32>
    %21 = arith.addf %12, %20 : vector<16x128xf32>
    %22 = vector.extract_strided_slice %0 {offsets = [0, 2], sizes = [16, 1], strides = [1, 1]} : vector<16x8xi32> to vector<16x1xi32>
    %23 = vector.broadcast %22 : vector<16x1xi32> to vector<16x128xi32>
    %24 = arith.cmpi eq, %23, %2 : vector<16x128xi32>
    %25 = vector.extract_strided_slice %1 {offsets = [0, 2], sizes = [16, 1], strides = [1, 1]} : vector<16x8xf32> to vector<16x1xf32>
    %cst_5 = arith.constant 0.000000e+00 : f32
    %26 = vector.shape_cast %25 : vector<16x1xf32> to vector<16x1xf32>
    %27 = vector.broadcast %26 : vector<16x1xf32> to vector<16x128xf32>
    %28 = vector.broadcast %cst_5 : f32 to vector<16x128xf32>
    %29 = arith.select %24, %27, %28 : vector<16x128xi1>, vector<16x128xf32>
    %30 = arith.addf %21, %29 : vector<16x128xf32>
    %31 = vector.extract_strided_slice %0 {offsets = [0, 3], sizes = [16, 1], strides = [1, 1]} : vector<16x8xi32> to vector<16x1xi32>
    %32 = vector.broadcast %31 : vector<16x1xi32> to vector<16x128xi32>
    %33 = arith.cmpi eq, %32, %2 : vector<16x128xi32>
    %34 = vector.extract_strided_slice %1 {offsets = [0, 3], sizes = [16, 1], strides = [1, 1]} : vector<16x8xf32> to vector<16x1xf32>
    %cst_6 = arith.constant 0.000000e+00 : f32
    %35 = vector.shape_cast %34 : vector<16x1xf32> to vector<16x1xf32>
    %36 = vector.broadcast %35 : vector<16x1xf32> to vector<16x128xf32>
    %37 = vector.broadcast %cst_6 : f32 to vector<16x128xf32>
    %38 = arith.select %33, %36, %37 : vector<16x128xi1>, vector<16x128xf32>
    %39 = arith.addf %30, %38 : vector<16x128xf32>
    %40 = vector.extract_strided_slice %0 {offsets = [0, 4], sizes = [16, 1], strides = [1, 1]} : vector<16x8xi32> to vector<16x1xi32>
    %41 = vector.broadcast %40 : vector<16x1xi32> to vector<16x128xi32>
    %42 = arith.cmpi eq, %41, %2 : vector<16x128xi32>
    %43 = vector.extract_strided_slice %1 {offsets = [0, 4], sizes = [16, 1], strides = [1, 1]} : vector<16x8xf32> to vector<16x1xf32>
    %cst_7 = arith.constant 0.000000e+00 : f32
    %44 = vector.shape_cast %43 : vector<16x1xf32> to vector<16x1xf32>
    %45 = vector.broadcast %44 : vector<16x1xf32> to vector<16x128xf32>
    %46 = vector.broadcast %cst_7 : f32 to vector<16x128xf32>
    %47 = arith.select %42, %45, %46 : vector<16x128xi1>, vector<16x128xf32>
    %48 = arith.addf %39, %47 : vector<16x128xf32>
    %49 = vector.extract_strided_slice %0 {offsets = [0, 5], sizes = [16, 1], strides = [1, 1]} : vector<16x8xi32> to vector<16x1xi32>
    %50 = vector.broadcast %49 : vector<16x1xi32> to vector<16x128xi32>
    %51 = arith.cmpi eq, %50, %2 : vector<16x128xi32>
    %52 = vector.extract_strided_slice %1 {offsets = [0, 5], sizes = [16, 1], strides = [1, 1]} : vector<16x8xf32> to vector<16x1xf32>
    %cst_8 = arith.constant 0.000000e+00 : f32
    %53 = vector.shape_cast %52 : vector<16x1xf32> to vector<16x1xf32>
    %54 = vector.broadcast %53 : vector<16x1xf32> to vector<16x128xf32>
    %55 = vector.broadcast %cst_8 : f32 to vector<16x128xf32>
    %56 = arith.select %51, %54, %55 : vector<16x128xi1>, vector<16x128xf32>
    %57 = arith.addf %48, %56 : vector<16x128xf32>
    %58 = vector.extract_strided_slice %0 {offsets = [0, 6], sizes = [16, 1], strides = [1, 1]} : vector<16x8xi32> to vector<16x1xi32>
    %59 = vector.broadcast %58 : vector<16x1xi32> to vector<16x128xi32>
    %60 = arith.cmpi eq, %59, %2 : vector<16x128xi32>
    %61 = vector.extract_strided_slice %1 {offsets = [0, 6], sizes = [16, 1], strides = [1, 1]} : vector<16x8xf32> to vector<16x1xf32>
    %cst_9 = arith.constant 0.000000e+00 : f32
    %62 = vector.shape_cast %61 : vector<16x1xf32> to vector<16x1xf32>
    %63 = vector.broadcast %62 : vector<16x1xf32> to vector<16x128xf32>
    %64 = vector.broadcast %cst_9 : f32 to vector<16x128xf32>
    %65 = arith.select %60, %63, %64 : vector<16x128xi1>, vector<16x128xf32>
    %66 = arith.addf %57, %65 : vector<16x128xf32>
    %67 = vector.extract_strided_slice %0 {offsets = [0, 7], sizes = [16, 1], strides = [1, 1]} : vector<16x8xi32> to vector<16x1xi32>
    %68 = vector.broadcast %67 : vector<16x1xi32> to vector<16x128xi32>
    %69 = arith.cmpi eq, %68, %2 : vector<16x128xi32>
    %70 = vector.extract_strided_slice %1 {offsets = [0, 7], sizes = [16, 1], strides = [1, 1]} : vector<16x8xf32> to vector<16x1xf32>
    %cst_10 = arith.constant 0.000000e+00 : f32
    %71 = vector.shape_cast %70 : vector<16x1xf32> to vector<16x1xf32>
    %72 = vector.broadcast %71 : vector<16x1xf32> to vector<16x128xf32>
    %73 = vector.broadcast %cst_10 : f32 to vector<16x128xf32>
    %74 = arith.select %69, %72, %73 : vector<16x128xi1>, vector<16x128xf32>
    %75 = arith.addf %66, %74 : vector<16x128xf32>
    %cst_11 = arith.constant dense<0.000000e+00> : vector<16xf32>
    %76 = vector.multi_reduction <add>, %1, %cst_11 [1] : vector<16x8xf32> to vector<16xf32>
    %77 = vector.shape_cast %76 : vector<16xf32> to vector<16x1xf32>
    %cst_12 = arith.constant 1.000000e+00 : f32
    %78 = vector.broadcast %cst_12 : f32 to vector<16x1xf32>
    %79 = arith.maximumf %77, %78 : vector<16x1xf32>
    %cst_13 = arith.constant 1.000000e+00 : f32
    %80 = vector.broadcast %cst_13 : f32 to vector<16x1xf32>
    %81 = arith.divf %80, %79 : vector<16x1xf32>
    %c0_14 = arith.constant 0 : index
    %c0_15 = arith.constant 0 : index
    %82 = vector.load %arg5[%c0_14, %c0_15] : memref<128x128xbf16, #tpu.memory_space<vmem>>, vector<128x128xbf16>
    %83 = arith.truncf %75 : vector<16x128xf32> to vector<16x128xbf16>
    %cst_16 = arith.constant dense<0.000000e+00> : vector<16x128xf32>
    %84 = tpu.matmul %83, %82, %cst_16 {dimension_numbers = #tpu.dot_dimension_numbers<[1], [0], [0], [1], [0, 0, 1, 1], [], []>} : vector<16x128xbf16>, vector<128x128xbf16>, vector<16x128xf32> -> vector<16x128xf32>
    %85 = vector.broadcast %81 : vector<16x1xf32> to vector<16x128xf32>
    %86 = arith.mulf %84, %85 : vector<16x128xf32>
    %c0_17 = arith.constant 0 : index
    %c0_18 = arith.constant 0 : index
    %87 = vector.load %arg6[%c0_17, %c0_18] : memref<1408x128xbf16, #tpu.memory_space<vmem>>, vector<128x128xbf16>
    %88 = arith.truncf %86 : vector<16x128xf32> to vector<16x128xbf16>
    %cst_19 = arith.constant dense<0.000000e+00> : vector<16x128xf32>
    %89 = tpu.matmul %88, %87, %cst_19 {dimension_numbers = #tpu.dot_dimension_numbers<[1], [0], [0], [1], [0, 0, 1, 1], [], []>} : vector<16x128xbf16>, vector<128x128xbf16>, vector<16x128xf32> -> vector<16x128xf32>
    %c0_20 = arith.constant 0 : index
    %c0_21 = arith.constant 0 : index
    %90 = vector.load %arg8[%c0_20, %c0_21] : memref<9x256xf32, #tpu.memory_space<vmem>>, vector<1x128xf32>
    %91 = vector.broadcast %90 : vector<1x128xf32> to vector<16x128xf32>
    %92 = arith.addf %89, %91 : vector<16x128xf32>
    %93 = math.tanh %92 : vector<16x128xf32>
    %c128 = arith.constant 128 : index
    %c0_22 = arith.constant 0 : index
    %94 = vector.load %arg6[%c128, %c0_22] : memref<1408x128xbf16, #tpu.memory_space<vmem>>, vector<128x128xbf16>
    %95 = arith.truncf %93 : vector<16x128xf32> to vector<16x128xbf16>
    %cst_23 = arith.constant dense<0.000000e+00> : vector<16x128xf32>
    %96 = tpu.matmul %95, %94, %cst_23 {dimension_numbers = #tpu.dot_dimension_numbers<[1], [0], [0], [1], [0, 0, 1, 1], [], []>} : vector<16x128xbf16>, vector<128x128xbf16>, vector<16x128xf32> -> vector<16x128xf32>
    %c1 = arith.constant 1 : index
    %c0_24 = arith.constant 0 : index
    %97 = vector.load %arg8[%c1, %c0_24] : memref<9x256xf32, #tpu.memory_space<vmem>>, vector<1x128xf32>
    %98 = vector.broadcast %97 : vector<1x128xf32> to vector<16x128xf32>
    %99 = arith.addf %96, %98 : vector<16x128xf32>
    %cst_25 = arith.constant 0.000000e+00 : f32
    %100 = vector.broadcast %cst_25 : f32 to vector<16x128xf32>
    %101 = arith.maximumf %99, %100 : vector<16x128xf32>
    %c0_26 = arith.constant 0 : index
    %c0_27 = arith.constant 0 : index
    %102 = vector.load %arg3[%c0_26, %c0_27] : memref<16x128xf32, #tpu.memory_space<vmem>>, vector<16x128xf32>
    %c256 = arith.constant 256 : index
    %c0_28 = arith.constant 0 : index
    %103 = vector.load %arg6[%c256, %c0_28] : memref<1408x128xbf16, #tpu.memory_space<vmem>>, vector<128x128xbf16>
    %104 = arith.truncf %102 : vector<16x128xf32> to vector<16x128xbf16>
    %cst_29 = arith.constant dense<0.000000e+00> : vector<16x128xf32>
    %105 = tpu.matmul %104, %103, %cst_29 {dimension_numbers = #tpu.dot_dimension_numbers<[1], [0], [0], [1], [0, 0, 1, 1], [], []>} : vector<16x128xbf16>, vector<128x128xbf16>, vector<16x128xf32> -> vector<16x128xf32>
    %c2 = arith.constant 2 : index
    %c0_30 = arith.constant 0 : index
    %106 = vector.load %arg8[%c2, %c0_30] : memref<9x256xf32, #tpu.memory_space<vmem>>, vector<1x128xf32>
    %107 = vector.broadcast %106 : vector<1x128xf32> to vector<16x128xf32>
    %108 = arith.addf %105, %107 : vector<16x128xf32>
    %cst_31 = arith.constant 0.000000e+00 : f32
    %109 = vector.broadcast %cst_31 : f32 to vector<16x128xf32>
    %110 = arith.maximumf %108, %109 : vector<16x128xf32>
    %c0_32 = arith.constant 0 : index
    %c0_33 = arith.constant 0 : index
    %111 = vector.load %arg7[%c0_32, %c0_33] : memref<128x256xbf16, #tpu.memory_space<vmem>>, vector<128x256xbf16>
    %112 = arith.truncf %110 : vector<16x128xf32> to vector<16x128xbf16>
    %cst_34 = arith.constant dense<0.000000e+00> : vector<16x256xf32>
    %113 = tpu.matmul %112, %111, %cst_34 {dimension_numbers = #tpu.dot_dimension_numbers<[1], [0], [0], [1], [0, 0, 1, 1], [], []>} : vector<16x128xbf16>, vector<128x256xbf16>, vector<16x256xf32> -> vector<16x256xf32>
    %c3 = arith.constant 3 : index
    %c0_35 = arith.constant 0 : index
    %114 = vector.load %arg8[%c3, %c0_35] : memref<9x256xf32, #tpu.memory_space<vmem>>, vector<1x256xf32>
    %115 = vector.broadcast %114 : vector<1x256xf32> to vector<16x256xf32>
    %116 = arith.addf %113, %115 : vector<16x256xf32>
    %cst_36 = arith.constant 0.000000e+00 : f32
    %117 = vector.broadcast %cst_36 : f32 to vector<16x256xf32>
    %118 = arith.maximumf %116, %117 : vector<16x256xf32>
    %c0_37 = arith.constant 0 : index
    %c0_38 = arith.constant 0 : index
    %119 = vector.load %arg4[%c0_37, %c0_38] : memref<16x128xf32, #tpu.memory_space<vmem>>, vector<16x128xf32>
    %c384 = arith.constant 384 : index
    %c0_39 = arith.constant 0 : index
    %120 = vector.load %arg6[%c384, %c0_39] : memref<1408x128xbf16, #tpu.memory_space<vmem>>, vector<128x128xbf16>
    %121 = arith.truncf %119 : vector<16x128xf32> to vector<16x128xbf16>
    %cst_40 = arith.constant dense<0.000000e+00> : vector<16x128xf32>
    %122 = tpu.matmul %121, %120, %cst_40 {dimension_numbers = #tpu.dot_dimension_numbers<[1], [0], [0], [1], [0, 0, 1, 1], [], []>} : vector<16x128xbf16>, vector<128x128xbf16>, vector<16x128xf32> -> vector<16x128xf32>
    %c4 = arith.constant 4 : index
    %c0_41 = arith.constant 0 : index
    %123 = vector.load %arg8[%c4, %c0_41] : memref<9x256xf32, #tpu.memory_space<vmem>>, vector<1x128xf32>
    %124 = vector.broadcast %123 : vector<1x128xf32> to vector<16x128xf32>
    %125 = arith.addf %122, %124 : vector<16x128xf32>
    %cst_42 = arith.constant 0.000000e+00 : f32
    %126 = vector.broadcast %cst_42 : f32 to vector<16x128xf32>
    %127 = arith.maximumf %125, %126 : vector<16x128xf32>
    %c512 = arith.constant 512 : index
    %c0_43 = arith.constant 0 : index
    %128 = vector.load %arg6[%c512, %c0_43] : memref<1408x128xbf16, #tpu.memory_space<vmem>>, vector<128x128xbf16>
    %129 = arith.truncf %127 : vector<16x128xf32> to vector<16x128xbf16>
    %cst_44 = arith.constant dense<0.000000e+00> : vector<16x128xf32>
    %130 = tpu.matmul %129, %128, %cst_44 {dimension_numbers = #tpu.dot_dimension_numbers<[1], [0], [0], [1], [0, 0, 1, 1], [], []>} : vector<16x128xbf16>, vector<128x128xbf16>, vector<16x128xf32> -> vector<16x128xf32>
    %c5 = arith.constant 5 : index
    %c0_45 = arith.constant 0 : index
    %131 = vector.load %arg8[%c5, %c0_45] : memref<9x256xf32, #tpu.memory_space<vmem>>, vector<1x128xf32>
    %132 = vector.broadcast %131 : vector<1x128xf32> to vector<16x128xf32>
    %133 = arith.addf %130, %132 : vector<16x128xf32>
    %cst_46 = arith.constant 0.000000e+00 : f32
    %134 = vector.broadcast %cst_46 : f32 to vector<16x128xf32>
    %135 = arith.maximumf %133, %134 : vector<16x128xf32>
    %136 = arith.truncf %101 : vector<16x128xf32> to vector<16x128xbf16>
    %137 = arith.truncf %118 : vector<16x256xf32> to vector<16x256xbf16>
    %138 = arith.truncf %135 : vector<16x128xf32> to vector<16x128xbf16>
    %139 = tpu.concatenate %136, %137, %138 in 1 : vector<16x128xbf16>, vector<16x256xbf16>, vector<16x128xbf16> -> vector<16x512xbf16>
    %c640 = arith.constant 640 : index
    %c0_47 = arith.constant 0 : index
    %140 = vector.load %arg6[%c640, %c0_47] : memref<1408x128xbf16, #tpu.memory_space<vmem>>, vector<512x128xbf16>
    %cst_48 = arith.constant dense<0.000000e+00> : vector<16x128xf32>
    %141 = tpu.matmul %139, %140, %cst_48 {dimension_numbers = #tpu.dot_dimension_numbers<[1], [0], [0], [1], [0, 0, 1, 1], [], []>} : vector<16x512xbf16>, vector<512x128xbf16>, vector<16x128xf32> -> vector<16x128xf32>
    %c6 = arith.constant 6 : index
    %c0_49 = arith.constant 0 : index
    %142 = vector.load %arg8[%c6, %c0_49] : memref<9x256xf32, #tpu.memory_space<vmem>>, vector<1x128xf32>
    %143 = vector.broadcast %142 : vector<1x128xf32> to vector<16x128xf32>
    %144 = arith.addf %141, %143 : vector<16x128xf32>
    %cst_50 = arith.constant 0.000000e+00 : f32
    %145 = vector.broadcast %cst_50 : f32 to vector<16x128xf32>
    %146 = arith.maximumf %144, %145 : vector<16x128xf32>
    %c1152 = arith.constant 1152 : index
    %c0_51 = arith.constant 0 : index
    %147 = vector.load %arg6[%c1152, %c0_51] : memref<1408x128xbf16, #tpu.memory_space<vmem>>, vector<128x128xbf16>
    %148 = arith.truncf %146 : vector<16x128xf32> to vector<16x128xbf16>
    %cst_52 = arith.constant dense<0.000000e+00> : vector<16x128xf32>
    %149 = tpu.matmul %148, %147, %cst_52 {dimension_numbers = #tpu.dot_dimension_numbers<[1], [0], [0], [1], [0, 0, 1, 1], [], []>} : vector<16x128xbf16>, vector<128x128xbf16>, vector<16x128xf32> -> vector<16x128xf32>
    %c7 = arith.constant 7 : index
    %c0_53 = arith.constant 0 : index
    %150 = vector.load %arg8[%c7, %c0_53] : memref<9x256xf32, #tpu.memory_space<vmem>>, vector<1x128xf32>
    %151 = vector.broadcast %150 : vector<1x128xf32> to vector<16x128xf32>
    %152 = arith.addf %149, %151 : vector<16x128xf32>
    %cst_54 = arith.constant 0.000000e+00 : f32
    %153 = vector.broadcast %cst_54 : f32 to vector<16x128xf32>
    %154 = arith.maximumf %152, %153 : vector<16x128xf32>
    %c1280 = arith.constant 1280 : index
    %c0_55 = arith.constant 0 : index
    %155 = vector.load %arg6[%c1280, %c0_55] : memref<1408x128xbf16, #tpu.memory_space<vmem>>, vector<128x128xbf16>
    %156 = arith.truncf %154 : vector<16x128xf32> to vector<16x128xbf16>
    %cst_56 = arith.constant dense<0.000000e+00> : vector<16x128xf32>
    %157 = tpu.matmul %156, %155, %cst_56 {dimension_numbers = #tpu.dot_dimension_numbers<[1], [0], [0], [1], [0, 0, 1, 1], [], []>} : vector<16x128xbf16>, vector<128x128xbf16>, vector<16x128xf32> -> vector<16x128xf32>
    %c8 = arith.constant 8 : index
    %c0_57 = arith.constant 0 : index
    %158 = vector.load %arg8[%c8, %c0_57] : memref<9x256xf32, #tpu.memory_space<vmem>>, vector<1x128xf32>
    %159 = vector.broadcast %158 : vector<1x128xf32> to vector<16x128xf32>
    %160 = arith.addf %157, %159 : vector<16x128xf32>
    %c0_58 = arith.constant 0 : index
    %c0_59 = arith.constant 0 : index
    %161 = vector.load %arg9[%c0_58, %c0_59] : memref<16x128xf32, #tpu.memory_space<vmem>>, vector<16x128xf32>
    tpu.vector_store %arg9[%c0_58, %c0_59], %160 {strides = array<i32>} : memref<16x128xf32, #tpu.memory_space<vmem>>, vector<16x128xf32>,
    return
  }
  func.func @transform_0(%arg0: i32) -> (i32, i32) {
    %c0_i32 = arith.constant 0 : i32
    %c0_i32_0 = arith.constant 0 : i32
    return %arg0, %c0_i32 : i32, i32
  }
  func.func @transform_1(%arg0: i32) -> (i32, i32) {
    %c0_i32 = arith.constant 0 : i32
    %c0_i32_0 = arith.constant 0 : i32
    return %arg0, %c0_i32 : i32, i32
  }
  func.func @transform_2(%arg0: i32) -> (i32, i32) {
    %c0_i32 = arith.constant 0 : i32
    %c0_i32_0 = arith.constant 0 : i32
    return %arg0, %c0_i32 : i32, i32
  }
  func.func @transform_3(%arg0: i32) -> (i32, i32) {
    %c0_i32 = arith.constant 0 : i32
    %c0_i32_0 = arith.constant 0 : i32
    return %arg0, %c0_i32 : i32, i32
  }
  func.func @transform_4(%arg0: i32) -> (i32, i32) {
    %c0_i32 = arith.constant 0 : i32
    %c0_i32_0 = arith.constant 0 : i32
    %c0_i32_1 = arith.constant 0 : i32
    return %c0_i32, %c0_i32_0 : i32, i32
  }
  func.func @transform_5(%arg0: i32) -> (i32, i32) {
    %c0_i32 = arith.constant 0 : i32
    %c0_i32_0 = arith.constant 0 : i32
    %c0_i32_1 = arith.constant 0 : i32
    return %c0_i32, %c0_i32_0 : i32, i32
  }
  func.func @transform_6(%arg0: i32) -> (i32, i32) {
    %c0_i32 = arith.constant 0 : i32
    %c0_i32_0 = arith.constant 0 : i32
    %c0_i32_1 = arith.constant 0 : i32
    return %c0_i32, %c0_i32_0 : i32, i32
  }
  func.func @transform_7(%arg0: i32) -> (i32, i32) {
    %c0_i32 = arith.constant 0 : i32
    %c0_i32_0 = arith.constant 0 : i32
    %c0_i32_1 = arith.constant 0 : i32
    return %c0_i32, %c0_i32_0 : i32, i32
  }
  func.func @transform_8(%arg0: i32) -> (i32, i32) {
    %c0_i32 = arith.constant 0 : i32
    %c0_i32_0 = arith.constant 0 : i32
    return %arg0, %c0_i32 : i32, i32
  }
}

</mosaic_0001>

<llo_original>
// kernel: tpu_custom_call.1
$region0: #{tpu_custom_call.1}
  #allocation0 [shape = 'u32[]', space=smem, size = 0x4, offset = 0x4, fixed_abs, tag = 'smem constant byte address 0x4 - core index']
  #allocation1 [shape = 'u32[144,128]{1,0:T(1,128)}', space=vmem, size = 0x12000, scoped, tag = 'internal scratch']
  %s0 = inlined_call_operand.vmem [shape: s32[32,8], index: 0, kind: input, shape index: {}]
  %s1 = inlined_call_operand.vmem [shape: f32[32,8], index: 1, kind: input, shape index: {}]
  %s2 = inlined_call_operand.hbm [shape: f32[32,128], index: 2, kind: input, shape index: {}]
  %s3 = inlined_call_operand.hbm [shape: f32[32,128], index: 3, kind: input, shape index: {}]
  %s4 = inlined_call_operand.vmem [shape: bf16[128,128], index: 4, kind: input, shape index: {}]
  %s5 = inlined_call_operand.hbm [shape: bf16[1408,128], index: 5, kind: input, shape index: {}]
  %s6 = inlined_call_operand.hbm [shape: bf16[128,256], index: 6, kind: input, shape index: {}]
  %s7 = inlined_call_operand.hbm [shape: f32[9,256], index: 7, kind: input, shape index: {}]
  %s8 = inlined_call_operand.hbm [shape: f32[32,128], index: 8, kind: output, shape index: {}]
  %s9 = sld [smem:[#allocation0]]
  $region85: #{tpu_custom_call.1} parent=0
    _
  %s11 = ssub.s32 1, %s9
  %s12 = scalar_select 0, %s11, %s9
  $region1: #{tpu_custom_call.1} parent=0
    #allocation2 [shape = 'u8[16384]{0}', space=vmem, size = 0x4000, scoped, tag = 'input window, operand 2']
    #allocation3 [shape = 's32[2]{0}', space=sflag, size = 0x8, scoped, tag = 'scoped memory for tpu_custom_call.1']
    #allocation4 [shape = 's32[2]{0}', space=sflag, size = 0x8, scoped, tag = 'scoped memory for tpu_custom_call.1']
    #allocation5 [shape = 'u8[16384]{0}', space=vmem, size = 0x4000, scoped, tag = 'input window, operand 3']
    #allocation6 [shape = 's32[2]{0}', space=sflag, size = 0x8, scoped, tag = 'scoped memory for tpu_custom_call.1']
    #allocation7 [shape = 'u8[360448]{0}', space=vmem, size = 0x58000, scoped, tag = 'input window, operand 5, single buffered']
    #allocation8 [shape = 'u8[65536]{0}', space=vmem, size = 0x10000, scoped, tag = 'input window, operand 6, single buffered']
    #allocation9 [shape = 's32[1]{0}', space=sflag, size = 0x4, scoped, tag = 'scoped memory for tpu_custom_call.1']
    #allocation10 [shape = 'u8[16384]{0}', space=vmem, size = 0x4000, scoped, tag = 'input window, operand 7, single buffered']
    #allocation11 [shape = 'u8[16384]{0}', space=vmem, size = 0x4000, scoped, tag = 'output window, operand 0']
    %13 = vsyncpa [#allocation3], 0
    %s14 = scalar_lea.sflag [#allocation3], 1
    %15 = vsyncpa %s14, 0
    %16 = vsyncpa [#allocation6], 0
    %s17 = scalar_lea.sflag [#allocation6], 1
    %18 = vsyncpa %s17, 0
    %19 = vsyncpa [#allocation9], 0
    %20 = vsyncpa [#allocation4], 0
    %s21 = scalar_lea.sflag [#allocation4], 1
    %22 = vsyncpa %s21, 0
    loop: start=0, step=1, limit=4
    $region2: #{tpu_custom_call.1} parent=1 // loop_pre_header
      _
    $region3: #{tpu_custom_call.1} parent=1 // loop_header
      %s24 = sphi 0, %s28
      %p25 = scmp.ge.s32.totalorder %s24, 4
      %s34 = sphi 0, %s36
      %s37 = sphi 0, %s34
      %s38 = sphi 0, %s37
      %s54 = sphi 0, %s38
      %s60 = sphi 0, %s62
      %s63 = sphi 0, %s60
      %s64 = sphi 0, %s63
      %s80 = sphi 0, %s64
      %s86 = sphi 0, %s88
      %s89 = sphi 0, %s86
      %s90 = sphi 0, %s89
      %s106 = sphi 0, %s90
      %s112 = sphi 0, %s114
      %s115 = sphi 0, %s112
      %s116 = sphi 0, %s115
      %s132 = sphi 0, %s116
      %s136 = sphi 0, %s136
      %s138 = sphi 0, %s136
      %s139 = sphi 0, %s138
      %s153 = sphi 0, %s139
      %s157 = sphi 0, %s157
      %s159 = sphi 0, %s157
      %s160 = sphi 0, %s159
      %s174 = sphi 0, %s160
      %s178 = sphi 0, %s178
      %s180 = sphi 0, %s178
      %s181 = sphi 0, %s180
      %s195 = sphi 0, %s181
      %s199 = sphi 0, %s199
      %s201 = sphi 0, %s199
      %s202 = sphi 0, %s201
      %s216 = sphi 0, %s202
      %s222 = sphi 0, %s224
      %s225 = sphi 0, %s222
      %s226 = sphi 0, %s225
      %s242 = sphi 0, %s226
    $region4: #{tpu_custom_call.1} parent=1 // loop_header_branch
      %27 = sbr.rel (%p25) target = $region8
    $region5: #{tpu_custom_call.1} parent=1 // loop_body
      %s29 = ssub.s32 %s24, 1
      %s30 = ssub.s32 %s24, 2
      %s31 = sadd.s32 %s24, 1
      %s32 = ssub.s32 %s24, %s31
      %p33 = scmp.eq.s32.totalorder %s32, 0
      %s35 = sadd.s32 %s34, 1
      %s36 = scalar_select %p33, %s34, %s35
      %p39 = pneg %p33
      %p40 = scmp.eq.s32.totalorder %s24, 1
      %p41 = por %p39, %p40
      %p42 = scmp.ne.s32.totalorder %s34, %s37
      %p43 = scmp.eq.s32.totalorder %s24, 0
      %p44 = por %p42, %p43
      %p45 = scmp.ne.s32.totalorder %s34, %s37
      %p46 = scmp.eq.s32.totalorder %s29, 1
      %p47 = por %p45, %p46
      %p48 = scmp.ne.s32.totalorder %s37, %s38
      %p49 = scmp.eq.s32.totalorder %s29, 0
      %p50 = por %p48, %p49
      %p51 = scmp.ne.s32.totalorder %s37, %s38
      %p52 = scmp.eq.s32.totalorder %s30, 1
      %p53 = por %p51, %p52
      %p55 = scmp.ne.s32.totalorder %s38, %s54
      %p56 = scmp.eq.s32.totalorder %s30, 0
      %p57 = por %p55, %p56
      %s58 = ssub.s32 %s24, %s31
      %p59 = scmp.eq.s32.totalorder %s58, 0
      %s61 = sadd.s32 %s60, 1
      %s62 = scalar_select %p59, %s60, %s61
      %p65 = pneg %p59
      %p66 = scmp.eq.s32.totalorder %s24, 1
      %p67 = por %p65, %p66
      %p68 = scmp.ne.s32.totalorder %s60, %s63
      %p69 = scmp.eq.s32.totalorder %s24, 0
      %p70 = por %p68, %p69
      %p71 = scmp.ne.s32.totalorder %s60, %s63
      %p72 = scmp.eq.s32.totalorder %s29, 1
      %p73 = por %p71, %p72
      %p74 = scmp.ne.s32.totalorder %s63, %s64
      %p75 = scmp.eq.s32.totalorder %s29, 0
      %p76 = por %p74, %p75
      %p77 = scmp.ne.s32.totalorder %s63, %s64
      %p78 = scmp.eq.s32.totalorder %s30, 1
      %p79 = por %p77, %p78
      %p81 = scmp.ne.s32.totalorder %s64, %s80
      %p82 = scmp.eq.s32.totalorder %s30, 0
      %p83 = por %p81, %p82
      %s84 = ssub.s32 %s24, %s31
      %p85 = scmp.eq.s32.totalorder %s84, 0
      %s87 = sadd.s32 %s86, 1
      %s88 = scalar_select %p85, %s86, %s87
      %p91 = pneg %p85
      %p92 = scmp.eq.s32.totalorder %s24, 1
      %p93 = por %p91, %p92
      %p94 = scmp.ne.s32.totalorder %s86, %s89
      %p95 = scmp.eq.s32.totalorder %s24, 0
      %p96 = por %p94, %p95
      %p97 = scmp.ne.s32.totalorder %s86, %s89
      %p98 = scmp.eq.s32.totalorder %s29, 1
      %p99 = por %p97, %p98
      %p100 = scmp.ne.s32.totalorder %s89, %s90
      %p101 = scmp.eq.s32.totalorder %s29, 0
      %p102 = por %p100, %p101
      %p103 = scmp.ne.s32.totalorder %s89, %s90
      %p104 = scmp.eq.s32.totalorder %s30, 1
      %p105 = por %p103, %p104
      %p107 = scmp.ne.s32.totalorder %s90, %s106
      %p108 = scmp.eq.s32.totalorder %s30, 0
      %p109 = por %p107, %p108
      %s110 = ssub.s32 %s24, %s31
      %p111 = scmp.eq.s32.totalorder %s110, 0
      %s113 = sadd.s32 %s112, 1
      %s114 = scalar_select %p111, %s112, %s113
      %p117 = pneg %p111
      %p118 = scmp.eq.s32.totalorder %s24, 1
      %p119 = por %p117, %p118
      %p120 = scmp.ne.s32.totalorder %s112, %s115
      %p121 = scmp.eq.s32.totalorder %s24, 0
      %p122 = por %p120, %p121
      %p123 = scmp.ne.s32.totalorder %s112, %s115
      %p124 = scmp.eq.s32.totalorder %s29, 1
      %p125 = por %p123, %p124
      %p126 = scmp.ne.s32.totalorder %s115, %s116
      %p127 = scmp.eq.s32.totalorder %s29, 0
      %p128 = por %p126, %p127
      %p129 = scmp.ne.s32.totalorder %s115, %s116
      %p130 = scmp.eq.s32.totalorder %s30, 1
      %p131 = por %p129, %p130
      %p133 = scmp.ne.s32.totalorder %s116, %s132
      %p134 = scmp.eq.s32.totalorder %s30, 0
      %p135 = por %p133, %p134
      %s137 = sadd.s32 %s136, 1
      %p140 = scmp.eq.s32.totalorder %s24, 1
      %p141 = scmp.ne.s32.totalorder %s136, %s138
      %p142 = scmp.eq.s32.totalorder %s24, 0
      %p143 = por %p141, %p142
      %p144 = scmp.ne.s32.totalorder %s136, %s138
      %p145 = scmp.eq.s32.totalorder %s29, 1
      %p146 = por %p144, %p145
      %p147 = scmp.ne.s32.totalorder %s138, %s139
      %p148 = scmp.eq.s32.totalorder %s29, 0
      %p149 = por %p147, %p148
      %p150 = scmp.ne.s32.totalorder %s138, %s139
      %p151 = scmp.eq.s32.totalorder %s30, 1
      %p152 = por %p150, %p151
      %p154 = scmp.ne.s32.totalorder %s139, %s153
      %p155 = scmp.eq.s32.totalorder %s30, 0
      %p156 = por %p154, %p155
      %s158 = sadd.s32 %s157, 1
      %p161 = scmp.eq.s32.totalorder %s24, 1
      %p162 = scmp.ne.s32.totalorder %s157, %s159
      %p163 = scmp.eq.s32.totalorder %s24, 0
      %p164 = por %p162, %p163
      %p165 = scmp.ne.s32.totalorder %s157, %s159
      %p166 = scmp.eq.s32.totalorder %s29, 1
      %p167 = por %p165, %p166
      %p168 = scmp.ne.s32.totalorder %s159, %s160
      %p169 = scmp.eq.s32.totalorder %s29, 0
      %p170 = por %p168, %p169
      %p171 = scmp.ne.s32.totalorder %s159, %s160
      %p172 = scmp.eq.s32.totalorder %s30, 1
      %p173 = por %p171, %p172
      %p175 = scmp.ne.s32.totalorder %s160, %s174
      %p176 = scmp.eq.s32.totalorder %s30, 0
      %p177 = por %p175, %p176
      %s179 = sadd.s32 %s178, 1
      %p182 = scmp.eq.s32.totalorder %s24, 1
      %p183 = scmp.ne.s32.totalorder %s178, %s180
      %p184 = scmp.eq.s32.totalorder %s24, 0
      %p185 = por %p183, %p184
      %p186 = scmp.ne.s32.totalorder %s178, %s180
      %p187 = scmp.eq.s32.totalorder %s29, 1
      %p188 = por %p186, %p187
      %p189 = scmp.ne.s32.totalorder %s180, %s181
      %p190 = scmp.eq.s32.totalorder %s29, 0
      %p191 = por %p189, %p190
      %p192 = scmp.ne.s32.totalorder %s180, %s181
      %p193 = scmp.eq.s32.totalorder %s30, 1
      %p194 = por %p192, %p193
      %p196 = scmp.ne.s32.totalorder %s181, %s195
      %p197 = scmp.eq.s32.totalorder %s30, 0
      %p198 = por %p196, %p197
      %s200 = sadd.s32 %s199, 1
      %p203 = scmp.eq.s32.totalorder %s24, 1
      %p204 = scmp.ne.s32.totalorder %s199, %s201
      %p205 = scmp.eq.s32.totalorder %s24, 0
      %p206 = por %p204, %p205
      %p207 = scmp.ne.s32.totalorder %s199, %s201
      %p208 = scmp.eq.s32.totalorder %s29, 1
      %p209 = por %p207, %p208
      %p210 = scmp.ne.s32.totalorder %s201, %s202
      %p211 = scmp.eq.s32.totalorder %s29, 0
      %p212 = por %p210, %p211
      %p213 = scmp.ne.s32.totalorder %s201, %s202
      %p214 = scmp.eq.s32.totalorder %s30, 1
      %p215 = por %p213, %p214
      %p217 = scmp.ne.s32.totalorder %s202, %s216
      %p218 = scmp.eq.s32.totalorder %s30, 0
      %p219 = por %p217, %p218
      %s220 = ssub.s32 %s24, %s31
      %p221 = scmp.eq.s32.totalorder %s220, 0
      %s223 = sadd.s32 %s222, 1
      %s224 = scalar_select %p221, %s222, %s223
      %p227 = pneg %p221
      %p228 = scmp.eq.s32.totalorder %s24, 1
      %p229 = por %p227, %p228
      %p230 = scmp.ne.s32.totalorder %s222, %s225
      %p231 = scmp.eq.s32.totalorder %s24, 0
      %p232 = por %p230, %p231
      %p233 = scmp.ne.s32.totalorder %s222, %s225
      %p234 = scmp.eq.s32.totalorder %s29, 1
      %p235 = por %p233, %p234
      %p236 = scmp.ne.s32.totalorder %s225, %s226
      %p237 = scmp.eq.s32.totalorder %s29, 0
      %p238 = por %p236, %p237
      %p239 = scmp.ne.s32.totalorder %s225, %s226
      %p240 = scmp.eq.s32.totalorder %s30, 1
      %p241 = por %p239, %p240
      %p243 = scmp.ne.s32.totalorder %s226, %s242
      %p244 = scmp.eq.s32.totalorder %s30, 0
      %p245 = por %p243, %p244
      %p246 = scmp.le.s32.totalorder 1, %s24
      %p247 = scmp.lt.s32.totalorder %s24, 3
      %p248 = pnand %p246, %p247
      %p249 = pneg %p248
      // Predicated region
      $region9: #{tpu_custom_call.1} parent=5 // pred_check
        _
      $region10: #{tpu_custom_call.1} parent=5 // pred_check_branch
        %251 = sbr.rel (%p248) target = $region12
      $region11: #{tpu_custom_call.1} parent=5 // pred_region
        %s252 = ssub.s32 %s24, 1
        // Predicated region
        $region13: #{tpu_custom_call.1} parent=11 // pred_check
          %p253 = pneg %p149
        $region14: #{tpu_custom_call.1} parent=11 // pred_check_branch
          %255 = sbr.rel (%p253) target = $region16
        $region15: #{tpu_custom_call.1} parent=11 // pred_region
          _
        $region16: #{tpu_custom_call.1} parent=11 // pred_fallthru
          _
        // Predicated region
        $region17: #{tpu_custom_call.1} parent=11 // pred_check
          %p256 = pneg %p170
        $region18: #{tpu_custom_call.1} parent=11 // pred_check_branch
          %258 = sbr.rel (%p256) target = $region20
        $region19: #{tpu_custom_call.1} parent=11 // pred_region
          %s260 = ssub.s32 11264, 11264
          %261 = vsyncadd [#allocation6], %s260
          %s262 = sshll.u32 [#allocation7], 4
          %s263 = int_to_ptr.vmem [resolvable:$true] %s262
          %268 = dma.hbm_to_vmem [thread:$0]  %s5, 11264, %s263, [#allocation6], 64, 64, 4
        $region20: #{tpu_custom_call.1} parent=11 // pred_fallthru
          _
        // Predicated region
        $region21: #{tpu_custom_call.1} parent=11 // pred_check
          %p269 = pneg %p191
        $region22: #{tpu_custom_call.1} parent=11 // pred_check_branch
          %271 = sbr.rel (%p269) target = $region24
        $region23: #{tpu_custom_call.1} parent=11 // pred_region
          %s273 = ssub.s32 2048, 2048
          %274 = vsyncadd [#allocation9], %s273
          %s275 = sshll.u32 [#allocation8], 4
          %s276 = int_to_ptr.vmem [resolvable:$true] %s275
          %281 = dma.hbm_to_vmem [thread:$0]  %s6, 2048, %s276, [#allocation9], 128, 128, 8
        $region24: #{tpu_custom_call.1} parent=11 // pred_fallthru
          _
        // Predicated region
        $region25: #{tpu_custom_call.1} parent=11 // pred_check
          %p282 = pneg %p212
        $region26: #{tpu_custom_call.1} parent=11 // pred_check_branch
          %284 = sbr.rel (%p282) target = $region28
        $region27: #{tpu_custom_call.1} parent=11 // pred_region
          %s286 = ssub.s32 512, 512
          %287 = vsyncadd [#allocation9], %s286
          %s288 = sshll.u32 [#allocation10], 4
          %s289 = int_to_ptr.vmem [resolvable:$true] %s288
          %294 = dma.hbm_to_vmem [thread:$0]  %s7, 512, %s289, [#allocation9], 256, 256, 16
        $region28: #{tpu_custom_call.1} parent=11 // pred_fallthru
          _
      $region12: #{tpu_custom_call.1} parent=5 // pred_fallthru
        _
      %p295 = scmp.lt.s32.totalorder %s24, 2
      // Predicated region
      $region29: #{tpu_custom_call.1} parent=5 // pred_check
        %p296 = pneg %p295
      $region30: #{tpu_custom_call.1} parent=5 // pred_check_branch
        %298 = sbr.rel (%p296) target = $region32
      $region31: #{tpu_custom_call.1} parent=5 // pred_region
        // Predicated region
        $region33: #{tpu_custom_call.1} parent=31 // pred_check
          %p299 = pneg %p44
        $region34: #{tpu_custom_call.1} parent=31 // pred_check_branch
          %301 = sbr.rel (%p299) target = $region36
        $region35: #{tpu_custom_call.1} parent=31 // pred_region
          %s302 = smul.u32 2, %s24
          %p303 = scmp.lt.s32.totalorder %s302, 3
          %s304 = scalar_select %p303, %s302, 3
          %s305 = smul.addr %s304, 8
          %s306 = scalar_lea.vmem %s0, %s305
          %s307 = smul.u32 2, %s24
        $region36: #{tpu_custom_call.1} parent=31 // pred_fallthru
          _
        // Predicated region
        $region37: #{tpu_custom_call.1} parent=31 // pred_check
          %p308 = pneg %p70
        $region38: #{tpu_custom_call.1} parent=31 // pred_check_branch
          %310 = sbr.rel (%p308) target = $region40
        $region39: #{tpu_custom_call.1} parent=31 // pred_region
          %s311 = smul.u32 2, %s24
          %p312 = scmp.lt.s32.totalorder %s311, 3
          %s313 = scalar_select %p312, %s311, 3
          %s314 = smul.addr %s313, 8
          %s315 = scalar_lea.vmem %s1, %s314
          %s316 = smul.u32 2, %s24
        $region40: #{tpu_custom_call.1} parent=31 // pred_fallthru
          _
        // Predicated region
        $region41: #{tpu_custom_call.1} parent=31 // pred_check
          %p317 = pneg %p96
        $region42: #{tpu_custom_call.1} parent=31 // pred_check_branch
          %319 = sbr.rel (%p317) target = $region44
        $region43: #{tpu_custom_call.1} parent=31 // pred_region
          %s320 = sand.u32 %s86, 1
          %s321 = scalar_lea.sflag [#allocation3], %s320
          %s322 = sand.u32 %s86, 1
          %s323 = smul.addr %s322, 16
          %s324 = scalar_lea.vmem [#allocation2], %s323
          %s325 = smul.u32 2, %s24
          %s327 = ssub.s32 256, 256
          %328 = vsyncadd %s321, %s327
          %s329 = smul.addr %s325, 128
          %s330 = scalar_lea.hbm %s2, %s329
          %s331 = sshll.u32 %s324, 4
          %s332 = int_to_ptr.vmem [resolvable:$true] %s331
          %337 = dma.hbm_to_vmem [thread:$0]  %s330, 256, %s332, %s321, 128, 128, 8
        $region44: #{tpu_custom_call.1} parent=31 // pred_fallthru
          _
        // Predicated region
        $region45: #{tpu_custom_call.1} parent=31 // pred_check
          %p338 = pneg %p122
        $region46: #{tpu_custom_call.1} parent=31 // pred_check_branch
          %340 = sbr.rel (%p338) target = $region48
        $region47: #{tpu_custom_call.1} parent=31 // pred_region
          %s341 = sand.u32 %s24, 1
          %s342 = scalar_lea.sflag [#allocation6], %s341
          %s343 = sand.u32 %s112, 1
          %s344 = smul.addr %s343, 16
          %s345 = scalar_lea.vmem [#allocation5], %s344
          %s346 = smul.u32 2, %s24
          %s348 = ssub.s32 256, 256
          %349 = vsyncadd %s342, %s348
          %s350 = smul.addr %s346, 128
          %s351 = scalar_lea.hbm %s3, %s350
          %s352 = sshll.u32 %s345, 4
          %s353 = int_to_ptr.vmem [resolvable:$true] %s352
          %358 = dma.hbm_to_vmem [thread:$0]  %s351, 256, %s353, %s342, 128, 128, 8
        $region48: #{tpu_custom_call.1} parent=31 // pred_fallthru
          _
      $region32: #{tpu_custom_call.1} parent=5 // pred_fallthru
        _
      %p359 = scmp.le.s32.totalorder 1, %s24
      %p360 = scmp.lt.s32.totalorder %s24, 3
      %p361 = pnand %p359, %p360
      %p362 = pneg %p361
      // Predicated region
      $region49: #{tpu_custom_call.1} parent=5 // pred_check
        _
      $region50: #{tpu_custom_call.1} parent=5 // pred_check_branch
        %364 = sbr.rel (%p361) target = $region52
      $region51: #{tpu_custom_call.1} parent=5 // pred_region
        %s365 = ssub.s32 %s24, 1
        %s366 = sand.u32 %s89, 1
        %s367 = scalar_lea.sflag [#allocation3], %s366
        %s368 = sand.u32 %s89, 1
        %s369 = smul.addr %s368, 16
        %s370 = scalar_lea.vmem [#allocation2], %s369
        // Predicated region
        $region53: #{tpu_custom_call.1} parent=51 // pred_check
          %p371 = pneg %p102
        $region54: #{tpu_custom_call.1} parent=51 // pred_check_branch
          %373 = sbr.rel (%p371) target = $region56
        $region55: #{tpu_custom_call.1} parent=51 // pred_region
          %374 = dma.done %s367, 256
        $region56: #{tpu_custom_call.1} parent=51 // pred_fallthru
          _
        %s375 = sand.u32 %s29, 1
        %s376 = scalar_lea.sflag [#allocation6], %s375
        %s377 = sand.u32 %s115, 1
        %s378 = smul.addr %s377, 16
        %s379 = scalar_lea.vmem [#allocation5], %s378
        // Predicated region
        $region57: #{tpu_custom_call.1} parent=51 // pred_check
          %p380 = pneg %p128
        $region58: #{tpu_custom_call.1} parent=51 // pred_check_branch
          %382 = sbr.rel (%p380) target = $region60
        $region59: #{tpu_custom_call.1} parent=51 // pred_region
          %383 = dma.done %s376, 256
        $region60: #{tpu_custom_call.1} parent=51 // pred_fallthru
          _
        // Predicated region
        $region61: #{tpu_custom_call.1} parent=51 // pred_check
          %p384 = pneg %p170
        $region62: #{tpu_custom_call.1} parent=51 // pred_check_branch
          %386 = sbr.rel (%p384) target = $region64
        $region63: #{tpu_custom_call.1} parent=51 // pred_region
          %387 = dma.done [#allocation6], 11264
        $region64: #{tpu_custom_call.1} parent=51 // pred_fallthru
          _
        // Predicated region
        $region65: #{tpu_custom_call.1} parent=51 // pred_check
          %p388 = pneg %p191
        $region66: #{tpu_custom_call.1} parent=51 // pred_check_branch
          %390 = sbr.rel (%p388) target = $region68
        $region67: #{tpu_custom_call.1} parent=51 // pred_region
          %391 = dma.done [#allocation9], 2048
        $region68: #{tpu_custom_call.1} parent=51 // pred_fallthru
          _
        // Predicated region
        $region69: #{tpu_custom_call.1} parent=51 // pred_check
          %p392 = pneg %p212
        $region70: #{tpu_custom_call.1} parent=51 // pred_check_branch
          %394 = sbr.rel (%p392) target = $region72
        $region71: #{tpu_custom_call.1} parent=51 // pred_region
          %395 = dma.done [#allocation9], 512
        $region72: #{tpu_custom_call.1} parent=51 // pred_fallthru
          _
        %s396 = smul.u32 2, %s29
        %p397 = scmp.lt.s32.totalorder %s396, 3
        %s398 = scalar_select %p397, %s396, 3
        %s399 = smul.addr %s398, 8
        %s400 = scalar_lea.vmem %s0, %s399
        %p401 = pneg %p50
        %p402 = pneg %p47
        %s403 = smul.u32 2, %s29
        %p404 = scmp.lt.s32.totalorder %s403, 3
        %s405 = scalar_select %p404, %s403, 3
        %s406 = smul.addr %s405, 8
        %s407 = scalar_lea.vmem %s1, %s406
        %p408 = pneg %p76
        %p409 = pneg %p73
        %s410 = sand.u32 %s89, 1
        %s411 = scalar_lea.sflag [#allocation3], %s410
        %s412 = sand.u32 %s89, 1
        %s413 = smul.addr %s412, 16
        %s414 = scalar_lea.vmem [#allocation2], %s413
        %p415 = pneg %p102
        %p416 = pneg %p99
        %s417 = sand.u32 %s29, 1
        %s418 = scalar_lea.sflag [#allocation6], %s417
        %s419 = sand.u32 %s115, 1
        %s420 = smul.addr %s419, 16
        %s421 = scalar_lea.vmem [#allocation5], %s420
        %p422 = pneg %p128
        %p423 = pneg %p125
        %p424 = pneg %p149
        %p425 = pneg %p146
        %p426 = pneg %p170
        %p427 = pneg %p167
        %p428 = pneg %p191
        %p429 = pneg %p188
        %p430 = pneg %p212
        %p431 = pneg %p209
        %p432 = pneg %p238
        %p433 = pneg %p235
        %s434 = sand.u32 %s225, 1
        %s435 = scalar_lea.sflag [#allocation4], %s434
        %s436 = sand.u32 %s225, 1
        %s437 = smul.addr %s436, 16
        %s438 = scalar_lea.vmem [#allocation11], %s437
        %s439 = smul.u32 2, %s29
        %p440 = scmp.lt.s32.totalorder %s439, 3
        %s441 = scalar_select %p440, %s439, 3
        %s442 = smul.addr %s441, 8
        %s443 = scalar_lea.vmem %s0, %s442
        %s444 = smul.u32 2, %s29
        %s445 = smul.u32 2, %s29
        %p446 = scmp.lt.s32.totalorder %s445, 3
        %s447 = scalar_select %p446, %s445, 3
        %s448 = smul.addr %s447, 8
        %s449 = scalar_lea.vmem %s1, %s448
        %s450 = smul.u32 2, %s29
        %s451 = smul.u32 2, %s29
        %s452 = smul.u32 2, %s29
        %s453 = smul.u32 2, %s29
        %v455 = vld [vmem:[%s443] sm:$0xff]
        %v456 = vld [vmem:[%s443 + $0x8] sm:$0xff]
        %v457 = vld [vmem:[%s449] sm:$0xff]
        %v458 = vld [vmem:[%s449 + $0x8] sm:$0xff]
        %v459 = vlaneseq
        %v460 = vand.u32 %v459, 127
        %461 = vset.pattern.permute.xlu0 0
        %462 = vperm.xlu0 %461, %v455
        %v463 = vpop.permute.xlu0 %462
        %464 = vset.pattern.permute.xlu0 0
        %465 = vperm.xlu0 %464, %v456
        %v466 = vpop.permute.xlu0 %465
        %vm467 = vcmp.eq.s32.totalorder %v463, %v460
        %vm468 = vcmp.eq.s32.totalorder %v466, %v460
        %470 = vset.pattern.permute.xlu0 0
        %471 = vperm.xlu0 %470, %v457
        %v472 = vpop.permute.xlu0 %471
        %475 = vset.pattern.permute.xlu0 0
        %476 = vperm.xlu0 %475, %v458
        %v477 = vpop.permute.xlu0 %476
        %v479 = vsel %vm467, %v472, 0.0
        %v480 = vsel %vm468, %v477, 0.0
        %v481 = vadd.f32 %v479, 0.0
        %v482 = vadd.f32 %v480, 0.0
        %483 = vset.pattern.permute.xlu0 1
        %484 = vperm.xlu0 %483, %v455
        %v485 = vpop.permute.xlu0 %484
        %486 = vset.pattern.permute.xlu0 1
        %487 = vperm.xlu0 %486, %v456
        %v488 = vpop.permute.xlu0 %487
        %vm489 = vcmp.eq.s32.totalorder %v485, %v460
        %vm490 = vcmp.eq.s32.totalorder %v488, %v460
        %491 = vset.pattern.permute.xlu0 1
        %492 = vperm.xlu0 %491, %v457
        %v493 = vpop.permute.xlu0 %492
        %495 = vset.pattern.permute.xlu0 1
        %496 = vperm.xlu0 %495, %v458
        %v497 = vpop.permute.xlu0 %496
        %v499 = vsel %vm489, %v493, 0.0
        %v500 = vsel %vm490, %v497, 0.0
        %v501 = vadd.f32 %v481, %v499
        %v502 = vadd.f32 %v482, %v500
        %503 = vset.pattern.permute.xlu0 2
        %504 = vperm.xlu0 %503, %v455
        %v505 = vpop.permute.xlu0 %504
        %506 = vset.pattern.permute.xlu0 2
        %507 = vperm.xlu0 %506, %v456
        %v508 = vpop.permute.xlu0 %507
        %vm509 = vcmp.eq.s32.totalorder %v505, %v460
        %vm510 = vcmp.eq.s32.totalorder %v508, %v460
        %511 = vset.pattern.permute.xlu0 2
        %512 = vperm.xlu0 %511, %v457
        %v513 = vpop.permute.xlu0 %512
        %515 = vset.pattern.permute.xlu0 2
        %516 = vperm.xlu0 %515, %v458
        %v517 = vpop.permute.xlu0 %516
        %v519 = vsel %vm509, %v513, 0.0
        %v520 = vsel %vm510, %v517, 0.0
        %v521 = vadd.f32 %v501, %v519
        %v522 = vadd.f32 %v502, %v520
        %523 = vset.pattern.permute.xlu0 3
        %524 = vperm.xlu0 %523, %v455
        %v525 = vpop.permute.xlu0 %524
        %526 = vset.pattern.permute.xlu0 3
        %527 = vperm.xlu0 %526, %v456
        %v528 = vpop.permute.xlu0 %527
        %vm529 = vcmp.eq.s32.totalorder %v525, %v460
        %vm530 = vcmp.eq.s32.totalorder %v528, %v460
        %531 = vset.pattern.permute.xlu0 3
        %532 = vperm.xlu0 %531, %v457
        %v533 = vpop.permute.xlu0 %532
        %535 = vset.pattern.permute.xlu0 3
        %536 = vperm.xlu0 %535, %v458
        %v537 = vpop.permute.xlu0 %536
        %v539 = vsel %vm529, %v533, 0.0
        %v540 = vsel %vm530, %v537, 0.0
        %v541 = vadd.f32 %v521, %v539
        %v542 = vadd.f32 %v522, %v540
        %543 = vset.pattern.permute.xlu0 4
        %544 = vperm.xlu0 %543, %v455
        %v545 = vpop.permute.xlu0 %544
        %546 = vset.pattern.permute.xlu0 4
        %547 = vperm.xlu0 %546, %v456
        %v548 = vpop.permute.xlu0 %547
        %vm549 = vcmp.eq.s32.totalorder %v545, %v460
        %vm550 = vcmp.eq.s32.totalorder %v548, %v460
        %551 = vset.pattern.permute.xlu0 4
        %552 = vperm.xlu0 %551, %v457
        %v553 = vpop.permute.xlu0 %552
        %555 = vset.pattern.permute.xlu0 4
        %556 = vperm.xlu0 %555, %v458
        %v557 = vpop.permute.xlu0 %556
        %v559 = vsel %vm549, %v553, 0.0
        %v560 = vsel %vm550, %v557, 0.0
        %v561 = vadd.f32 %v541, %v559
        %v562 = vadd.f32 %v542, %v560
        %563 = vset.pattern.permute.xlu0 5
        %564 = vperm.xlu0 %563, %v455
        %v565 = vpop.permute.xlu0 %564
        %566 = vset.pattern.permute.xlu0 5
        %567 = vperm.xlu0 %566, %v456
        %v568 = vpop.permute.xlu0 %567
        %vm569 = vcmp.eq.s32.totalorder %v565, %v460
        %vm570 = vcmp.eq.s32.totalorder %v568, %v460
        %571 = vset.pattern.permute.xlu0 5
        %572 = vperm.xlu0 %571, %v457
        %v573 = vpop.permute.xlu0 %572
        %575 = vset.pattern.permute.xlu0 5
        %576 = vperm.xlu0 %575, %v458
        %v577 = vpop.permute.xlu0 %576
        %v579 = vsel %vm569, %v573, 0.0
        %v580 = vsel %vm570, %v577, 0.0
        %v581 = vadd.f32 %v561, %v579
        %v582 = vadd.f32 %v562, %v580
        %583 = vset.pattern.permute.xlu0 6
        %584 = vperm.xlu0 %583, %v455
        %v585 = vpop.permute.xlu0 %584
        %586 = vset.pattern.permute.xlu0 6
        %587 = vperm.xlu0 %586, %v456
        %v588 = vpop.permute.xlu0 %587
        %vm589 = vcmp.eq.s32.totalorder %v585, %v460
        %vm590 = vcmp.eq.s32.totalorder %v588, %v460
        %591 = vset.pattern.permute.xlu0 6
        %592 = vperm.xlu0 %591, %v457
        %v593 = vpop.permute.xlu0 %592
        %595 = vset.pattern.permute.xlu0 6
        %596 = vperm.xlu0 %595, %v458
        %v597 = vpop.permute.xlu0 %596
        %v599 = vsel %vm589, %v593, 0.0
        %v600 = vsel %vm590, %v597, 0.0
        %v601 = vadd.f32 %v581, %v599
        %v602 = vadd.f32 %v582, %v600
        %603 = vset.pattern.permute.xlu0 7
        %604 = vperm.xlu0 %603, %v455
        %v605 = vpop.permute.xlu0 %604
        %606 = vset.pattern.permute.xlu0 7
        %607 = vperm.xlu0 %606, %v456
        %v608 = vpop.permute.xlu0 %607
        %vm609 = vcmp.eq.s32.totalorder %v605, %v460
        %vm610 = vcmp.eq.s32.totalorder %v608, %v460
        %611 = vset.pattern.permute.xlu0 7
        %612 = vperm.xlu0 %611, %v457
        %v613 = vpop.permute.xlu0 %612
        %615 = vset.pattern.permute.xlu0 7
        %616 = vperm.xlu0 %615, %v458
        %v617 = vpop.permute.xlu0 %616
        %v619 = vsel %vm609, %v613, 0.0
        %v620 = vsel %vm610, %v617, 0.0
        %v621 = vadd.f32 %v601, %v619
        %v622 = vadd.f32 %v602, %v620
        %vm623 = vcmask 64512
        %v624 = vsel %vm623, %v457, 0.0
        %625 = vadd.xlane.f32.xlu0 %v624
        %v626 = vpop.xlane.xlu0 %625
        %v627 = vsel %vm623, %v458, 0.0
        %628 = vadd.xlane.f32.xlu0 %v627
        %v629 = vpop.xlane.xlu0 %628
        %v630 = vmax.f32 %v626, 1.0
        %v631 = vmax.f32 %v629, 1.0
        %v632 = vrcp.pop %v630
        %v633 = vmul.f32 1.0, %v632
        %v634 = vrcp.pop %v631
        %v635 = vmul.f32 1.0, %v634
        %v636 = vld [vmem:[%s4] sm:$0xf]
        %v637 = vld [vmem:[%s4 + $0x4] sm:$0xf]
        %v638 = vld [vmem:[%s4 + $0x8] sm:$0xf]
        %v639 = vld [vmem:[%s4 + $0xc] sm:$0xf]
        %v640 = vld [vmem:[%s4 + $0x10] sm:$0xf]
        %v641 = vld [vmem:[%s4 + $0x14] sm:$0xf]
        %v642 = vld [vmem:[%s4 + $0x18] sm:$0xf]
        %v643 = vld [vmem:[%s4 + $0x1c] sm:$0xf]
        %v644 = vld [vmem:[%s4 + $0x20] sm:$0xf]
        %v645 = vld [vmem:[%s4 + $0x24] sm:$0xf]
        %v646 = vld [vmem:[%s4 + $0x28] sm:$0xf]
        %v647 = vld [vmem:[%s4 + $0x2c] sm:$0xf]
        %v648 = vld [vmem:[%s4 + $0x30] sm:$0xf]
        %v649 = vld [vmem:[%s4 + $0x34] sm:$0xf]
        %v650 = vld [vmem:[%s4 + $0x38] sm:$0xf]
        %v651 = vld [vmem:[%s4 + $0x3c] sm:$0xf]
        %v652 = vpack.c.bf16 %v622, %v621
        %v669 = vunpack.c.l.b16 %v636
        %v670 = vunpack.c.l.b16 %v637
        %v671 = vunpack.c.l.b16 %v638
        %v672 = vunpack.c.l.b16 %v639
        %v673 = vunpack.c.l.b16 %v640
        %v674 = vunpack.c.l.b16 %v641
        %v675 = vunpack.c.l.b16 %v642
        %v676 = vunpack.c.l.b16 %v643
        %v677 = vunpack.c.l.b16 %v644
        %v678 = vunpack.c.l.b16 %v645
        %v679 = vunpack.c.l.b16 %v646
        %v680 = vunpack.c.l.b16 %v647
        %v681 = vunpack.c.l.b16 %v648
        %v682 = vunpack.c.l.b16 %v649
        %v683 = vunpack.c.l.b16 %v650
        %v684 = vunpack.c.l.b16 %v651
        %v685 = vpack.c.b16 %v670, %v669
        %v686 = vpack.c.b16 %v672, %v671
        %v687 = vpack.c.b16 %v674, %v673
        %v688 = vpack.c.b16 %v676, %v675
        %v689 = vpack.c.b16 %v678, %v677
        %v690 = vpack.c.b16 %v680, %v679
        %v691 = vpack.c.b16 %v682, %v681
        %v692 = vpack.c.b16 %v684, %v683
        %701 = vmatprep.subr.bf16.mxu0 0
        %702 = vmatpush1.bf16.msra.mxu0 %v692
        %703 = vmatprep.subr.bf16.mxu0 0
        %704 = vmatpush1.bf16.msra.mxu0 %v691
        %705 = vmatprep.subr.bf16.mxu0 0
        %706 = vmatpush1.bf16.msra.mxu0 %v690
        %707 = vmatprep.subr.bf16.mxu0 0
        %708 = vmatpush1.bf16.msra.mxu0 %v689
        %709 = vmatprep.subr.bf16.mxu0 0
        %710 = vmatpush1.bf16.msra.mxu0 %v688
        %711 = vmatprep.subr.bf16.mxu0 0
        %712 = vmatpush1.bf16.msra.mxu0 %v687
        %713 = vmatprep.subr.bf16.mxu0 0
        %714 = vmatpush1.bf16.msra.mxu0 %v686
        %715 = vmatprep.subr.bf16.mxu0 0
        %716 = vmatpush1.bf16.msra.mxu0 %v685
        %717 = vmatprep.subr.bf16.mxu0 0
        %718 = vmatpush2.bf16.msra.mxu0 0
        %719 = vmatprep.subr.bf16.mxu0 0
        %720 = vmatpush2.bf16.msra.mxu0 0
        %721 = vmatprep.subr.bf16.mxu0 0
        %722 = vmatpush2.bf16.msra.mxu0 0
        %723 = vmatprep.subr.bf16.mxu0 0
        %724 = vmatpush2.bf16.msra.mxu0 0
        %725 = vmatprep.subr.bf16.mxu0 0
        %726 = vmatpush2.bf16.msra.mxu0 0
        %727 = vmatprep.subr.bf16.mxu0 0
        %728 = vmatpush2.bf16.msra.mxu0 0
        %729 = vmatprep.subr.bf16.mxu0 0
        %730 = vmatpush2.bf16.msra.mxu0 0
        %731 = vmatprep.subr.bf16.mxu0 0
        %732 = vmatpush2.bf16.msra.mxu0 0
        %733 = vmatprep.mubr.bf16.mxu0 0
        %734 = vmatmul.mubr.bf16.gmra.mxu0 %v652
        %v735 = vpop.f32.mrf.mxu0
        %v736 = vadd.f32 0.0, %v735
        %v737 = vpop.f32.mrf.mxu0
        %v738 = vpop.f32.mrf.mxu0
        %v739 = vadd.f32 0.0, %v738
        %v740 = vpop.f32.mrf.mxu0
        %741 = vdwg.mxu0
        %v742 = vmul.f32 %v736, %v633
        %v743 = vmul.f32 %v739, %v635
        %v744 = vld [vmem:[#allocation7] sm:$0xf]
        %v745 = vld [vmem:[#allocation7 + $0x4] sm:$0xf]
        %v746 = vld [vmem:[#allocation7 + $0x8] sm:$0xf]
        %v747 = vld [vmem:[#allocation7 + $0xc] sm:$0xf]
        %v748 = vld [vmem:[#allocation7 + $0x10] sm:$0xf]
        %v749 = vld [vmem:[#allocation7 + $0x14] sm:$0xf]
        %v750 = vld [vmem:[#allocation7 + $0x18] sm:$0xf]
        %v751 = vld [vmem:[#allocation7 + $0x1c] sm:$0xf]
        %v752 = vld [vmem:[#allocation7 + $0x20] sm:$0xf]
        %v753 = vld [vmem:[#allocation7 + $0x24] sm:$0xf]
        %v754 = vld [vmem:[#allocation7 + $0x28] sm:$0xf]
        %v755 = vld [vmem:[#allocation7 + $0x2c] sm:$0xf]
        %v756 = vld [vmem:[#allocation7 + $0x30] sm:$0xf]
        %v757 = vld [vmem:[#allocation7 + $0x34] sm:$0xf]
        %v758 = vld [vmem:[#allocation7 + $0x38] sm:$0xf]
        %v759 = vld [vmem:[#allocation7 + $0x3c] sm:$0xf]
        %v760 = vpack.c.bf16 %v743, %v742
        %v761 = vld [vmem:[#allocation10] ss:$0 sm:$0xff]
        %v778 = vunpack.c.l.b16 %v744
        %v779 = vunpack.c.l.b16 %v745
        %v780 = vunpack.c.l.b16 %v746
        %v781 = vunpack.c.l.b16 %v747
        %v782 = vunpack.c.l.b16 %v748
        %v783 = vunpack.c.l.b16 %v749
        %v784 = vunpack.c.l.b16 %v750
        %v785 = vunpack.c.l.b16 %v751
        %v786 = vunpack.c.l.b16 %v752
        %v787 = vunpack.c.l.b16 %v753
        %v788 = vunpack.c.l.b16 %v754
        %v789 = vunpack.c.l.b16 %v755
        %v790 = vunpack.c.l.b16 %v756
        %v791 = vunpack.c.l.b16 %v757
        %v792 = vunpack.c.l.b16 %v758
        %v793 = vunpack.c.l.b16 %v759
        %v794 = vpack.c.b16 %v779, %v778
        %v795 = vpack.c.b16 %v781, %v780
        %v796 = vpack.c.b16 %v783, %v782
        %v797 = vpack.c.b16 %v785, %v784
        %v798 = vpack.c.b16 %v787, %v786
        %v799 = vpack.c.b16 %v789, %v788
        %v800 = vpack.c.b16 %v791, %v790
        %v801 = vpack.c.b16 %v793, %v792
        %810 = vmatprep.subr.bf16.mxu0 0
        %811 = vmatpush1.bf16.msra.mxu0 %v801
        %812 = vmatprep.subr.bf16.mxu0 0
        %813 = vmatpush1.bf16.msra.mxu0 %v800
        %814 = vmatprep.subr.bf16.mxu0 0
        %815 = vmatpush1.bf16.msra.mxu0 %v799
        %816 = vmatprep.subr.bf16.mxu0 0
        %817 = vmatpush1.bf16.msra.mxu0 %v798
        %818 = vmatprep.subr.bf16.mxu0 0
        %819 = vmatpush1.bf16.msra.mxu0 %v797
        %820 = vmatprep.subr.bf16.mxu0 0
        %821 = vmatpush1.bf16.msra.mxu0 %v796
        %822 = vmatprep.subr.bf16.mxu0 0
        %823 = vmatpush1.bf16.msra.mxu0 %v795
        %824 = vmatprep.subr.bf16.mxu0 0
        %825 = vmatpush1.bf16.msra.mxu0 %v794
        %826 = vmatprep.subr.bf16.mxu0 0
        %827 = vmatpush2.bf16.msra.mxu0 0
        %828 = vmatprep.subr.bf16.mxu0 0
        %829 = vmatpush2.bf16.msra.mxu0 0
        %830 = vmatprep.subr.bf16.mxu0 0
        %831 = vmatpush2.bf16.msra.mxu0 0
        %832 = vmatprep.subr.bf16.mxu0 0
        %833 = vmatpush2.bf16.msra.mxu0 0
        %834 = vmatprep.subr.bf16.mxu0 0
        %835 = vmatpush2.bf16.msra.mxu0 0
        %836 = vmatprep.subr.bf16.mxu0 0
        %837 = vmatpush2.bf16.msra.mxu0 0
        %838 = vmatprep.subr.bf16.mxu0 0
        %839 = vmatpush2.bf16.msra.mxu0 0
        %840 = vmatprep.subr.bf16.mxu0 0
        %841 = vmatpush2.bf16.msra.mxu0 0
        %842 = vmatprep.mubr.bf16.mxu0 0
        %843 = vmatmul.mubr.bf16.gmra.mxu0 %v760
        %v844 = vpop.f32.mrf.mxu0
        %v845 = vadd.f32 %v761, %v844
        %v846 = vpop.f32.mrf.mxu0
        %v847 = vpop.f32.mrf.mxu0
        %v848 = vadd.f32 %v761, %v847
        %v849 = vpop.f32.mrf.mxu0
        %850 = vdwg.mxu0
        %v851 = vtanh.pop %v845
        %v852 = vtanh.pop %v848
        %v853 = vld [vmem:[#allocation7 + $0x40] sm:$0xf]
        %v854 = vld [vmem:[#allocation7 + $0x44] sm:$0xf]
        %v855 = vld [vmem:[#allocation7 + $0x48] sm:$0xf]
        %v856 = vld [vmem:[#allocation7 + $0x4c] sm:$0xf]
        %v857 = vld [vmem:[#allocation7 + $0x50] sm:$0xf]
        %v858 = vld [vmem:[#allocation7 + $0x54] sm:$0xf]
        %v859 = vld [vmem:[#allocation7 + $0x58] sm:$0xf]
        %v860 = vld [vmem:[#allocation7 + $0x5c] sm:$0xf]
        %v861 = vld [vmem:[#allocation7 + $0x60] sm:$0xf]
        %v862 = vld [vmem:[#allocation7 + $0x64] sm:$0xf]
        %v863 = vld [vmem:[#allocation7 + $0x68] sm:$0xf]
        %v864 = vld [vmem:[#allocation7 + $0x6c] sm:$0xf]
        %v865 = vld [vmem:[#allocation7 + $0x70] sm:$0xf]
        %v866 = vld [vmem:[#allocation7 + $0x74] sm:$0xf]
        %v867 = vld [vmem:[#allocation7 + $0x78] sm:$0xf]
        %v868 = vld [vmem:[#allocation7 + $0x7c] sm:$0xf]
        %v869 = vpack.c.bf16 %v852, %v851
        %v870 = vld [vmem:[#allocation10 + $0x1] ss:$0 sm:$0xff]
        %v887 = vunpack.c.l.b16 %v853
        %v888 = vunpack.c.l.b16 %v854
        %v889 = vunpack.c.l.b16 %v855
        %v890 = vunpack.c.l.b16 %v856
        %v891 = vunpack.c.l.b16 %v857
        %v892 = vunpack.c.l.b16 %v858
        %v893 = vunpack.c.l.b16 %v859
        %v894 = vunpack.c.l.b16 %v860
        %v895 = vunpack.c.l.b16 %v861
        %v896 = vunpack.c.l.b16 %v862
        %v897 = vunpack.c.l.b16 %v863
        %v898 = vunpack.c.l.b16 %v864
        %v899 = vunpack.c.l.b16 %v865
        %v900 = vunpack.c.l.b16 %v866
        %v901 = vunpack.c.l.b16 %v867
        %v902 = vunpack.c.l.b16 %v868
        %v903 = vpack.c.b16 %v888, %v887
        %v904 = vpack.c.b16 %v890, %v889
        %v905 = vpack.c.b16 %v892, %v891
        %v906 = vpack.c.b16 %v894, %v893
        %v907 = vpack.c.b16 %v896, %v895
        %v908 = vpack.c.b16 %v898, %v897
        %v909 = vpack.c.b16 %v900, %v899
        %v910 = vpack.c.b16 %v902, %v901
        %919 = vmatprep.subr.bf16.mxu0 0
        %920 = vmatpush1.bf16.msra.mxu0 %v910
        %921 = vmatprep.subr.bf16.mxu0 0
        %922 = vmatpush1.bf16.msra.mxu0 %v909
        %923 = vmatprep.subr.bf16.mxu0 0
        %924 = vmatpush1.bf16.msra.mxu0 %v908
        %925 = vmatprep.subr.bf16.mxu0 0
        %926 = vmatpush1.bf16.msra.mxu0 %v907
        %927 = vmatprep.subr.bf16.mxu0 0
        %928 = vmatpush1.bf16.msra.mxu0 %v906
        %929 = vmatprep.subr.bf16.mxu0 0
        %930 = vmatpush1.bf16.msra.mxu0 %v905
        %931 = vmatprep.subr.bf16.mxu0 0
        %932 = vmatpush1.bf16.msra.mxu0 %v904
        %933 = vmatprep.subr.bf16.mxu0 0
        %934 = vmatpush1.bf16.msra.mxu0 %v903
        %935 = vmatprep.subr.bf16.mxu0 0
        %936 = vmatpush2.bf16.msra.mxu0 0
        %937 = vmatprep.subr.bf16.mxu0 0
        %938 = vmatpush2.bf16.msra.mxu0 0
        %939 = vmatprep.subr.bf16.mxu0 0
        %940 = vmatpush2.bf16.msra.mxu0 0
        %941 = vmatprep.subr.bf16.mxu0 0
        %942 = vmatpush2.bf16.msra.mxu0 0
        %943 = vmatprep.subr.bf16.mxu0 0
        %944 = vmatpush2.bf16.msra.mxu0 0
        %945 = vmatprep.subr.bf16.mxu0 0
        %946 = vmatpush2.bf16.msra.mxu0 0
        %947 = vmatprep.subr.bf16.mxu0 0
        %948 = vmatpush2.bf16.msra.mxu0 0
        %949 = vmatprep.subr.bf16.mxu0 0
        %950 = vmatpush2.bf16.msra.mxu0 0
        %951 = vmatprep.mubr.bf16.mxu0 0
        %952 = vmatmul.mubr.bf16.gmra.mxu0 %v869
        %v953 = vpop.f32.mrf.mxu0
        %v954 = vadd.f32 %v870, %v953
        %v955 = vpop.f32.mrf.mxu0
        %v956 = vpop.f32.mrf.mxu0
        %v957 = vadd.f32 %v870, %v956
        %v958 = vpop.f32.mrf.mxu0
        %959 = vdwg.mxu0
        %v960 = vmax.f32 %v954, 0.0
        %v961 = vmax.f32 %v957, 0.0
        %v962 = vld [vmem:[%s370] sm:$0xff]
        %v963 = vld [vmem:[%s370 + $0x8] sm:$0xff]
        %v964 = vld [vmem:[#allocation7 + $0x80] sm:$0xf]
        %v965 = vld [vmem:[#allocation7 + $0x84] sm:$0xf]
        %v966 = vld [vmem:[#allocation7 + $0x88] sm:$0xf]
        %v967 = vld [vmem:[#allocation7 + $0x8c] sm:$0xf]
        %v968 = vld [vmem:[#allocation7 + $0x90] sm:$0xf]
        %v969 = vld [vmem:[#allocation7 + $0x94] sm:$0xf]
        %v970 = vld [vmem:[#allocation7 + $0x98] sm:$0xf]
        %v971 = vld [vmem:[#allocation7 + $0x9c] sm:$0xf]
        %v972 = vld [vmem:[#allocation7 + $0xa0] sm:$0xf]
        %v973 = vld [vmem:[#allocation7 + $0xa4] sm:$0xf]
        %v974 = vld [vmem:[#allocation7 + $0xa8] sm:$0xf]
        %v975 = vld [vmem:[#allocation7 + $0xac] sm:$0xf]
        %v976 = vld [vmem:[#allocation7 + $0xb0] sm:$0xf]
        %v977 = vld [vmem:[#allocation7 + $0xb4] sm:$0xf]
        %v978 = vld [vmem:[#allocation7 + $0xb8] sm:$0xf]
        %v979 = vld [vmem:[#allocation7 + $0xbc] sm:$0xf]
        %v980 = vpack.c.bf16 %v963, %v962
        %v981 = vld [vmem:[#allocation10 + $0x2] ss:$0 sm:$0xff]
        %v998 = vunpack.c.l.b16 %v964
        %v999 = vunpack.c.l.b16 %v965
        %v1000 = vunpack.c.l.b16 %v966
        %v1001 = vunpack.c.l.b16 %v967
        %v1002 = vunpack.c.l.b16 %v968
        %v1003 = vunpack.c.l.b16 %v969
        %v1004 = vunpack.c.l.b16 %v970
        %v1005 = vunpack.c.l.b16 %v971
        %v1006 = vunpack.c.l.b16 %v972
        %v1007 = vunpack.c.l.b16 %v973
        %v1008 = vunpack.c.l.b16 %v974
        %v1009 = vunpack.c.l.b16 %v975
        %v1010 = vunpack.c.l.b16 %v976
        %v1011 = vunpack.c.l.b16 %v977
        %v1012 = vunpack.c.l.b16 %v978
        %v1013 = vunpack.c.l.b16 %v979
        %v1014 = vpack.c.b16 %v999, %v998
        %v1015 = vpack.c.b16 %v1001, %v1000
        %v1016 = vpack.c.b16 %v1003, %v1002
        %v1017 = vpack.c.b16 %v1005, %v1004
        %v1018 = vpack.c.b16 %v1007, %v1006
        %v1019 = vpack.c.b16 %v1009, %v1008
        %v1020 = vpack.c.b16 %v1011, %v1010
        %v1021 = vpack.c.b16 %v1013, %v1012
        %1030 = vmatprep.subr.bf16.mxu0 0
        %1031 = vmatpush1.bf16.msra.mxu0 %v1021
        %1032 = vmatprep.subr.bf16.mxu0 0
        %1033 = vmatpush1.bf16.msra.mxu0 %v1020
        %1034 = vmatprep.subr.bf16.mxu0 0
        %1035 = vmatpush1.bf16.msra.mxu0 %v1019
        %1036 = vmatprep.subr.bf16.mxu0 0
        %1037 = vmatpush1.bf16.msra.mxu0 %v1018
        %1038 = vmatprep.subr.bf16.mxu0 0
        %1039 = vmatpush1.bf16.msra.mxu0 %v1017
        %1040 = vmatprep.subr.bf16.mxu0 0
        %1041 = vmatpush1.bf16.msra.mxu0 %v1016
        %1042 = vmatprep.subr.bf16.mxu0 0
        %1043 = vmatpush1.bf16.msra.mxu0 %v1015
        %1044 = vmatprep.subr.bf16.mxu0 0
        %1045 = vmatpush1.bf16.msra.mxu0 %v1014
        %1046 = vmatprep.subr.bf16.mxu0 0
        %1047 = vmatpush2.bf16.msra.mxu0 0
        %1048 = vmatprep.subr.bf16.mxu0 0
        %1049 = vmatpush2.bf16.msra.mxu0 0
        %1050 = vmatprep.subr.bf16.mxu0 0
        %1051 = vmatpush2.bf16.msra.mxu0 0
        %1052 = vmatprep.subr.bf16.mxu0 0
        %1053 = vmatpush2.bf16.msra.mxu0 0
        %1054 = vmatprep.subr.bf16.mxu0 0
        %1055 = vmatpush2.bf16.msra.mxu0 0
        %1056 = vmatprep.subr.bf16.mxu0 0
        %1057 = vmatpush2.bf16.msra.mxu0 0
        %1058 = vmatprep.subr.bf16.mxu0 0
        %1059 = vmatpush2.bf16.msra.mxu0 0
        %1060 = vmatprep.subr.bf16.mxu0 0
        %1061 = vmatpush2.bf16.msra.mxu0 0
        %1062 = vmatprep.mubr.bf16.mxu0 0
        %1063 = vmatmul.mubr.bf16.gmra.mxu0 %v980
        %v1064 = vpop.f32.mrf.mxu0
        %v1065 = vadd.f32 %v981, %v1064
        %v1066 = vpop.f32.mrf.mxu0
        %v1067 = vpop.f32.mrf.mxu0
        %v1068 = vadd.f32 %v981, %v1067
        %v1069 = vpop.f32.mrf.mxu0
        %1070 = vdwg.mxu0
        %v1071 = vmax.f32 %v1065, 0.0
        %v1072 = vmax.f32 %v1068, 0.0
        %v1073 = vld [vmem:[#allocation8] sm:$0xff]
        %v1074 = vld [vmem:[#allocation8 + $0x8] sm:$0xff]
        %v1075 = vld [vmem:[#allocation8 + $0x10] sm:$0xff]
        %v1076 = vld [vmem:[#allocation8 + $0x18] sm:$0xff]
        %v1077 = vld [vmem:[#allocation8 + $0x20] sm:$0xff]
        %v1078 = vld [vmem:[#allocation8 + $0x28] sm:$0xff]
        %v1079 = vld [vmem:[#allocation8 + $0x30] sm:$0xff]
        %v1080 = vld [vmem:[#allocation8 + $0x38] sm:$0xff]
        %v1081 = vld [vmem:[#allocation8 + $0x40] sm:$0xff]
        %v1082 = vld [vmem:[#allocation8 + $0x48] sm:$0xff]
        %v1083 = vld [vmem:[#allocation8 + $0x50] sm:$0xff]
        %v1084 = vld [vmem:[#allocation8 + $0x58] sm:$0xff]
        %v1085 = vld [vmem:[#allocation8 + $0x60] sm:$0xff]
        %v1086 = vld [vmem:[#allocation8 + $0x68] sm:$0xff]
        %v1087 = vld [vmem:[#allocation8 + $0x70] sm:$0xff]
        %v1088 = vld [vmem:[#allocation8 + $0x78] sm:$0xff]
        %v1089 = vpack.c.bf16 %v1072, %v1071
        %s1090 = scalar_lea.vmem [#allocation10], 3
        %v1091 = vld [vmem:[%s1090] ss:$8 sm:$0x3]
        %v1093 = vlaneseq
        %v1094 = vshrl.u32 %v1093, 7
        %v1095 = vsub.s32 0, %v1094
        %v1096 = vrot.slane %v1091, %v1095
        %v1097 = vlaneseq
        %v1098 = vshrl.u32 %v1097, 7
        %v1099 = vsub.s32 1, %v1098
        %v1100 = vrot.slane %v1091, %v1099
        %v1119 = vunpack.c.l.b16 %v1073
        %v1120 = vunpack.c.h.b16 %v1073
        %v1121 = vunpack.c.l.b16 %v1074
        %v1122 = vunpack.c.h.b16 %v1074
        %v1123 = vunpack.c.l.b16 %v1075
        %v1124 = vunpack.c.h.b16 %v1075
        %v1125 = vunpack.c.l.b16 %v1076
        %v1126 = vunpack.c.h.b16 %v1076
        %v1127 = vunpack.c.l.b16 %v1077
        %v1128 = vunpack.c.h.b16 %v1077
        %v1129 = vunpack.c.l.b16 %v1078
        %v1130 = vunpack.c.h.b16 %v1078
        %v1131 = vunpack.c.l.b16 %v1079
        %v1132 = vunpack.c.h.b16 %v1079
        %v1133 = vunpack.c.l.b16 %v1080
        %v1134 = vunpack.c.h.b16 %v1080
        %v1135 = vunpack.c.l.b16 %v1081
        %v1136 = vunpack.c.h.b16 %v1081
        %v1137 = vunpack.c.l.b16 %v1082
        %v1138 = vunpack.c.h.b16 %v1082
        %v1139 = vunpack.c.l.b16 %v1083
        %v1140 = vunpack.c.h.b16 %v1083
        %v1141 = vunpack.c.l.b16 %v1084
        %v1142 = vunpack.c.h.b16 %v1084
        %v1143 = vunpack.c.l.b16 %v1085
        %v1144 = vunpack.c.h.b16 %v1085
        %v1145 = vunpack.c.l.b16 %v1086
        %v1146 = vunpack.c.h.b16 %v1086
        %v1147 = vunpack.c.l.b16 %v1087
        %v1148 = vunpack.c.h.b16 %v1087
        %v1149 = vunpack.c.l.b16 %v1088
        %v1150 = vunpack.c.h.b16 %v1088
        %v1151 = vpack.c.b16 %v1121, %v1119
        %v1152 = vpack.c.b16 %v1122, %v1120
        %v1153 = vpack.c.b16 %v1125, %v1123
        %v1154 = vpack.c.b16 %v1126, %v1124
        %v1155 = vpack.c.b16 %v1129, %v1127
        %v1156 = vpack.c.b16 %v1130, %v1128
        %v1157 = vpack.c.b16 %v1133, %v1131
        %v1158 = vpack.c.b16 %v1134, %v1132
        %v1159 = vpack.c.b16 %v1137, %v1135
        %v1160 = vpack.c.b16 %v1138, %v1136
        %v1161 = vpack.c.b16 %v1141, %v1139
        %v1162 = vpack.c.b16 %v1142, %v1140
        %v1163 = vpack.c.b16 %v1145, %v1143
        %v1164 = vpack.c.b16 %v1146, %v1144
        %v1165 = vpack.c.b16 %v1149, %v1147
        %v1166 = vpack.c.b16 %v1150, %v1148
        %1183 = vmatprep.subr.bf16.mxu0 %v1166
        %1184 = vmatpush1.bf16.msra.mxu0 %v1165
        %1185 = vmatprep.subr.bf16.mxu0 %v1164
        %1186 = vmatpush1.bf16.msra.mxu0 %v1163
        %1187 = vmatprep.subr.bf16.mxu0 %v1162
        %1188 = vmatpush1.bf16.msra.mxu0 %v1161
        %1189 = vmatprep.subr.bf16.mxu0 %v1160
        %1190 = vmatpush1.bf16.msra.mxu0 %v1159
        %1191 = vmatprep.subr.bf16.mxu0 %v1158
        %1192 = vmatpush1.bf16.msra.mxu0 %v1157
        %1193 = vmatprep.subr.bf16.mxu0 %v1156
        %1194 = vmatpush1.bf16.msra.mxu0 %v1155
        %1195 = vmatprep.subr.bf16.mxu0 %v1154
        %1196 = vmatpush1.bf16.msra.mxu0 %v1153
        %1197 = vmatprep.subr.bf16.mxu0 %v1152
        %1198 = vmatpush1.bf16.msra.mxu0 %v1151
        %1199 = vmatprep.subr.bf16.mxu0 0
        %1200 = vmatpush2.bf16.msra.mxu0 0
        %1201 = vmatprep.subr.bf16.mxu0 0
        %1202 = vmatpush2.bf16.msra.mxu0 0
        %1203 = vmatprep.subr.bf16.mxu0 0
        %1204 = vmatpush2.bf16.msra.mxu0 0
        %1205 = vmatprep.subr.bf16.mxu0 0
        %1206 = vmatpush2.bf16.msra.mxu0 0
        %1207 = vmatprep.subr.bf16.mxu0 0
        %1208 = vmatpush2.bf16.msra.mxu0 0
        %1209 = vmatprep.subr.bf16.mxu0 0
        %1210 = vmatpush2.bf16.msra.mxu0 0
        %1211 = vmatprep.subr.bf16.mxu0 0
        %1212 = vmatpush2.bf16.msra.mxu0 0
        %1213 = vmatprep.subr.bf16.mxu0 0
        %1214 = vmatpush2.bf16.msra.mxu0 0
        %1215 = vmatprep.mubr.bf16.mxu0 0
        %1216 = vmatmul.mubr.bf16.gmra.mxu0 %v1089
        %v1217 = vpop.f32.mrf.mxu0
        %v1218 = vadd.f32 %v1096, %v1217
        %v1219 = vpop.f32.mrf.mxu0
        %v1220 = vadd.f32 %v1100, %v1219
        %v1221 = vpop.f32.mrf.mxu0
        %v1222 = vadd.f32 %v1096, %v1221
        %v1223 = vpop.f32.mrf.mxu0
        %v1224 = vadd.f32 %v1100, %v1223
        %1225 = vdwg.mxu0
        %v1226 = vmax.f32 %v1218, 0.0
        %v1227 = vmax.f32 %v1220, 0.0
        %v1228 = vmax.f32 %v1222, 0.0
        %v1229 = vmax.f32 %v1224, 0.0
        %v1230 = vld [vmem:[%s379] sm:$0xff]
        %v1231 = vld [vmem:[%s379 + $0x8] sm:$0xff]
        %v1232 = vld [vmem:[#allocation7 + $0xc0] sm:$0xf]
        %v1233 = vld [vmem:[#allocation7 + $0xc4] sm:$0xf]
        %v1234 = vld [vmem:[#allocation7 + $0xc8] sm:$0xf]
        %v1235 = vld [vmem:[#allocation7 + $0xcc] sm:$0xf]
        %v1236 = vld [vmem:[#allocation7 + $0xd0] sm:$0xf]
        %v1237 = vld [vmem:[#allocation7 + $0xd4] sm:$0xf]
        %v1238 = vld [vmem:[#allocation7 + $0xd8] sm:$0xf]
        %v1239 = vld [vmem:[#allocation7 + $0xdc] sm:$0xf]
        %v1240 = vld [vmem:[#allocation7 + $0xe0] sm:$0xf]
        %v1241 = vld [vmem:[#allocation7 + $0xe4] sm:$0xf]
        %v1242 = vld [vmem:[#allocation7 + $0xe8] sm:$0xf]
        %v1243 = vld [vmem:[#allocation7 + $0xec] sm:$0xf]
        %v1244 = vld [vmem:[#allocation7 + $0xf0] sm:$0xf]
        %v1245 = vld [vmem:[#allocation7 + $0xf4] sm:$0xf]
        %v1246 = vld [vmem:[#allocation7 + $0xf8] sm:$0xf]
        %v1247 = vld [vmem:[#allocation7 + $0xfc] sm:$0xf]
        %v1248 = vpack.c.bf16 %v1231, %v1230
        %v1249 = vld [vmem:[#allocation10 + $0x4] ss:$0 sm:$0xff]
        %v1266 = vunpack.c.l.b16 %v1232
        %v1267 = vunpack.c.l.b16 %v1233
        %v1268 = vunpack.c.l.b16 %v1234
        %v1269 = vunpack.c.l.b16 %v1235
        %v1270 = vunpack.c.l.b16 %v1236
        %v1271 = vunpack.c.l.b16 %v1237
        %v1272 = vunpack.c.l.b16 %v1238
        %v1273 = vunpack.c.l.b16 %v1239
        %v1274 = vunpack.c.l.b16 %v1240
        %v1275 = vunpack.c.l.b16 %v1241
        %v1276 = vunpack.c.l.b16 %v1242
        %v1277 = vunpack.c.l.b16 %v1243
        %v1278 = vunpack.c.l.b16 %v1244
        %v1279 = vunpack.c.l.b16 %v1245
        %v1280 = vunpack.c.l.b16 %v1246
        %v1281 = vunpack.c.l.b16 %v1247
        %v1282 = vpack.c.b16 %v1267, %v1266
        %v1283 = vpack.c.b16 %v1269, %v1268
        %v1284 = vpack.c.b16 %v1271, %v1270
        %v1285 = vpack.c.b16 %v1273, %v1272
        %v1286 = vpack.c.b16 %v1275, %v1274
        %v1287 = vpack.c.b16 %v1277, %v1276
        %v1288 = vpack.c.b16 %v1279, %v1278
        %v1289 = vpack.c.b16 %v1281, %v1280
        %1298 = vmatprep.subr.bf16.mxu0 0
        %1299 = vmatpush1.bf16.msra.mxu0 %v1289
        %1300 = vmatprep.subr.bf16.mxu0 0
        %1301 = vmatpush1.bf16.msra.mxu0 %v1288
        %1302 = vmatprep.subr.bf16.mxu0 0
        %1303 = vmatpush1.bf16.msra.mxu0 %v1287
        %1304 = vmatprep.subr.bf16.mxu0 0
        %1305 = vmatpush1.bf16.msra.mxu0 %v1286
        %1306 = vmatprep.subr.bf16.mxu0 0
        %1307 = vmatpush1.bf16.msra.mxu0 %v1285
        %1308 = vmatprep.subr.bf16.mxu0 0
        %1309 = vmatpush1.bf16.msra.mxu0 %v1284
        %1310 = vmatprep.subr.bf16.mxu0 0
        %1311 = vmatpush1.bf16.msra.mxu0 %v1283
        %1312 = vmatprep.subr.bf16.mxu0 0
        %1313 = vmatpush1.bf16.msra.mxu0 %v1282
        %1314 = vmatprep.subr.bf16.mxu0 0
        %1315 = vmatpush2.bf16.msra.mxu0 0
        %1316 = vmatprep.subr.bf16.mxu0 0
        %1317 = vmatpush2.bf16.msra.mxu0 0
        %1318 = vmatprep.subr.bf16.mxu0 0
        %1319 = vmatpush2.bf16.msra.mxu0 0
        %1320 = vmatprep.subr.bf16.mxu0 0
        %1321 = vmatpush2.bf16.msra.mxu0 0
        %1322 = vmatprep.subr.bf16.mxu0 0
        %1323 = vmatpush2.bf16.msra.mxu0 0
        %1324 = vmatprep.subr.bf16.mxu0 0
        %1325 = vmatpush2.bf16.msra.mxu0 0
        %1326 = vmatprep.subr.bf16.mxu0 0
        %1327 = vmatpush2.bf16.msra.mxu0 0
        %1328 = vmatprep.subr.bf16.mxu0 0
        %1329 = vmatpush2.bf16.msra.mxu0 0
        %1330 = vmatprep.mubr.bf16.mxu0 0
        %1331 = vmatmul.mubr.bf16.gmra.mxu0 %v1248
        %v1332 = vpop.f32.mrf.mxu0
        %v1333 = vadd.f32 %v1249, %v1332
        %v1334 = vpop.f32.mrf.mxu0
        %v1335 = vpop.f32.mrf.mxu0
        %v1336 = vadd.f32 %v1249, %v1335
        %v1337 = vpop.f32.mrf.mxu0
        %1338 = vdwg.mxu0
        %v1339 = vmax.f32 %v1333, 0.0
        %v1340 = vmax.f32 %v1336, 0.0
        %v1341 = vld [vmem:[#allocation7 + $0x100] sm:$0xf]
        %v1342 = vld [vmem:[#allocation7 + $0x104] sm:$0xf]
        %v1343 = vld [vmem:[#allocation7 + $0x108] sm:$0xf]
        %v1344 = vld [vmem:[#allocation7 + $0x10c] sm:$0xf]
        %v1345 = vld [vmem:[#allocation7 + $0x110] sm:$0xf]
        %v1346 = vld [vmem:[#allocation7 + $0x114] sm:$0xf]
        %v1347 = vld [vmem:[#allocation7 + $0x118] sm:$0xf]
        %v1348 = vld [vmem:[#allocation7 + $0x11c] sm:$0xf]
        %v1349 = vld [vmem:[#allocation7 + $0x120] sm:$0xf]
        %v1350 = vld [vmem:[#allocation7 + $0x124] sm:$0xf]
        %v1351 = vld [vmem:[#allocation7 + $0x128] sm:$0xf]
        %v1352 = vld [vmem:[#allocation7 + $0x12c] sm:$0xf]
        %v1353 = vld [vmem:[#allocation7 + $0x130] sm:$0xf]
        %v1354 = vld [vmem:[#allocation7 + $0x134] sm:$0xf]
        %v1355 = vld [vmem:[#allocation7 + $0x138] sm:$0xf]
        %v1356 = vld [vmem:[#allocation7 + $0x13c] sm:$0xf]
        %v1357 = vpack.c.bf16 %v1340, %v1339
        %v1358 = vld [vmem:[#allocation10 + $0x5] ss:$0 sm:$0xff]
        %v1375 = vunpack.c.l.b16 %v1341
        %v1376 = vunpack.c.l.b16 %v1342
        %v1377 = vunpack.c.l.b16 %v1343
        %v1378 = vunpack.c.l.b16 %v1344
        %v1379 = vunpack.c.l.b16 %v1345
        %v1380 = vunpack.c.l.b16 %v1346
        %v1381 = vunpack.c.l.b16 %v1347
        %v1382 = vunpack.c.l.b16 %v1348
        %v1383 = vunpack.c.l.b16 %v1349
        %v1384 = vunpack.c.l.b16 %v1350
        %v1385 = vunpack.c.l.b16 %v1351
        %v1386 = vunpack.c.l.b16 %v1352
        %v1387 = vunpack.c.l.b16 %v1353
        %v1388 = vunpack.c.l.b16 %v1354
        %v1389 = vunpack.c.l.b16 %v1355
        %v1390 = vunpack.c.l.b16 %v1356
        %v1391 = vpack.c.b16 %v1376, %v1375
        %v1392 = vpack.c.b16 %v1378, %v1377
        %v1393 = vpack.c.b16 %v1380, %v1379
        %v1394 = vpack.c.b16 %v1382, %v1381
        %v1395 = vpack.c.b16 %v1384, %v1383
        %v1396 = vpack.c.b16 %v1386, %v1385
        %v1397 = vpack.c.b16 %v1388, %v1387
        %v1398 = vpack.c.b16 %v1390, %v1389
        %1407 = vmatprep.subr.bf16.mxu0 0
        %1408 = vmatpush1.bf16.msra.mxu0 %v1398
        %1409 = vmatprep.subr.bf16.mxu0 0
        %1410 = vmatpush1.bf16.msra.mxu0 %v1397
        %1411 = vmatprep.subr.bf16.mxu0 0
        %1412 = vmatpush1.bf16.msra.mxu0 %v1396
        %1413 = vmatprep.subr.bf16.mxu0 0
        %1414 = vmatpush1.bf16.msra.mxu0 %v1395
        %1415 = vmatprep.subr.bf16.mxu0 0
        %1416 = vmatpush1.bf16.msra.mxu0 %v1394
        %1417 = vmatprep.subr.bf16.mxu0 0
        %1418 = vmatpush1.bf16.msra.mxu0 %v1393
        %1419 = vmatprep.subr.bf16.mxu0 0
        %1420 = vmatpush1.bf16.msra.mxu0 %v1392
        %1421 = vmatprep.subr.bf16.mxu0 0
        %1422 = vmatpush1.bf16.msra.mxu0 %v1391
        %1423 = vmatprep.subr.bf16.mxu0 0
        %1424 = vmatpush2.bf16.msra.mxu0 0
        %1425 = vmatprep.subr.bf16.mxu0 0
        %1426 = vmatpush2.bf16.msra.mxu0 0
        %1427 = vmatprep.subr.bf16.mxu0 0
        %1428 = vmatpush2.bf16.msra.mxu0 0
        %1429 = vmatprep.subr.bf16.mxu0 0
        %1430 = vmatpush2.bf16.msra.mxu0 0
        %1431 = vmatprep.subr.bf16.mxu0 0
        %1432 = vmatpush2.bf16.msra.mxu0 0
        %1433 = vmatprep.subr.bf16.mxu0 0
        %1434 = vmatpush2.bf16.msra.mxu0 0
        %1435 = vmatprep.subr.bf16.mxu0 0
        %1436 = vmatpush2.bf16.msra.mxu0 0
        %1437 = vmatprep.subr.bf16.mxu0 0
        %1438 = vmatpush2.bf16.msra.mxu0 0
        %1439 = vmatprep.mubr.bf16.mxu0 0
        %1440 = vmatmul.mubr.bf16.gmra.mxu0 %v1357
        %v1441 = vpop.f32.mrf.mxu0
        %v1442 = vadd.f32 %v1358, %v1441
        %v1443 = vpop.f32.mrf.mxu0
        %v1444 = vpop.f32.mrf.mxu0
        %v1445 = vadd.f32 %v1358, %v1444
        %v1446 = vpop.f32.mrf.mxu0
        %1447 = vdwg.mxu0
        %v1448 = vmax.f32 %v1442, 0.0
        %v1449 = vmax.f32 %v1445, 0.0
        %v1450 = vpack.c.bf16 %v961, %v960
        %v1451 = vpack.c.bf16 %v1228, %v1226
        %v1452 = vpack.c.bf16 %v1229, %v1227
        %v1453 = vpack.c.bf16 %v1449, %v1448
        %v1454 = vld [vmem:[#allocation7 + $0x140] sm:$0xf]
        %v1455 = vld [vmem:[#allocation7 + $0x144] sm:$0xf]
        %v1456 = vld [vmem:[#allocation7 + $0x148] sm:$0xf]
        %v1457 = vld [vmem:[#allocation7 + $0x14c] sm:$0xf]
        %v1458 = vld [vmem:[#allocation7 + $0x150] sm:$0xf]
        %v1459 = vld [vmem:[#allocation7 + $0x154] sm:$0xf]
        %v1460 = vld [vmem:[#allocation7 + $0x158] sm:$0xf]
        %v1461 = vld [vmem:[#allocation7 + $0x15c] sm:$0xf]
        %v1462 = vld [vmem:[#allocation7 + $0x160] sm:$0xf]
        %v1463 = vld [vmem:[#allocation7 + $0x164] sm:$0xf]
        %v1464 = vld [vmem:[#allocation7 + $0x168] sm:$0xf]
        %v1465 = vld [vmem:[#allocation7 + $0x16c] sm:$0xf]
        %v1466 = vld [vmem:[#allocation7 + $0x170] sm:$0xf]
        %v1467 = vld [vmem:[#allocation7 + $0x174] sm:$0xf]
        %v1468 = vld [vmem:[#allocation7 + $0x178] sm:$0xf]
        %v1469 = vld [vmem:[#allocation7 + $0x17c] sm:$0xf]
        %v1470 = vld [vmem:[#allocation7 + $0x180] sm:$0xf]
        %v1471 = vld [vmem:[#allocation7 + $0x184] sm:$0xf]
        %v1472 = vld [vmem:[#allocation7 + $0x188] sm:$0xf]
        %v1473 = vld [vmem:[#allocation7 + $0x18c] sm:$0xf]
        %v1474 = vld [vmem:[#allocation7 + $0x190] sm:$0xf]
        %v1475 = vld [vmem:[#allocation7 + $0x194] sm:$0xf]
        %v1476 = vld [vmem:[#allocation7 + $0x198] sm:$0xf]
        %v1477 = vld [vmem:[#allocation7 + $0x19c] sm:$0xf]
        %v1478 = vld [vmem:[#allocation7 + $0x1a0] sm:$0xf]
        %v1479 = vld [vmem:[#allocation7 + $0x1a4] sm:$0xf]
        %v1480 = vld [vmem:[#allocation7 + $0x1a8] sm:$0xf]
        %v1481 = vld [vmem:[#allocation7 + $0x1ac] sm:$0xf]
        %v1482 = vld [vmem:[#allocation7 + $0x1b0] sm:$0xf]
        %v1483 = vld [vmem:[#allocation7 + $0x1b4] sm:$0xf]
        %v1484 = vld [vmem:[#allocation7 + $0x1b8] sm:$0xf]
        %v1485 = vld [vmem:[#allocation7 + $0x1bc] sm:$0xf]
        %v1486 = vld [vmem:[#allocation7 + $0x1c0] sm:$0xf]
        %v1487 = vld [vmem:[#allocation7 + $0x1c4] sm:$0xf]
        %v1488 = vld [vmem:[#allocation7 + $0x1c8] sm:$0xf]
        %v1489 = vld [vmem:[#allocation7 + $0x1cc] sm:$0xf]
        %v1490 = vld [vmem:[#allocation7 + $0x1d0] sm:$0xf]
        %v1491 = vld [vmem:[#allocation7 + $0x1d4] sm:$0xf]
        %v1492 = vld [vmem:[#allocation7 + $0x1d8] sm:$0xf]
        %v1493 = vld [vmem:[#allocation7 + $0x1dc] sm:$0xf]
        %v1494 = vld [vmem:[#allocation7 + $0x1e0] sm:$0xf]
        %v1495 = vld [vmem:[#allocation7 + $0x1e4] sm:$0xf]
        %v1496 = vld [vmem:[#allocation7 + $0x1e8] sm:$0xf]
        %v1497 = vld [vmem:[#allocation7 + $0x1ec] sm:$0xf]
        %v1498 = vld [vmem:[#allocation7 + $0x1f0] sm:$0xf]
        %v1499 = vld [vmem:[#allocation7 + $0x1f4] sm:$0xf]
        %v1500 = vld [vmem:[#allocation7 + $0x1f8] sm:$0xf]
        %v1501 = vld [vmem:[#allocation7 + $0x1fc] sm:$0xf]
        %v1502 = vld [vmem:[#allocation7 + $0x200] sm:$0xf]
        %v1503 = vld [vmem:[#allocation7 + $0x204] sm:$0xf]
        %v1504 = vld [vmem:[#allocation7 + $0x208] sm:$0xf]
        %v1505 = vld [vmem:[#allocation7 + $0x20c] sm:$0xf]
        %v1506 = vld [vmem:[#allocation7 + $0x210] sm:$0xf]
        %v1507 = vld [vmem:[#allocation7 + $0x214] sm:$0xf]
        %v1508 = vld [vmem:[#allocation7 + $0x218] sm:$0xf]
        %v1509 = vld [vmem:[#allocation7 + $0x21c] sm:$0xf]
        %v1510 = vld [vmem:[#allocation7 + $0x220] sm:$0xf]
        %v1511 = vld [vmem:[#allocation7 + $0x224] sm:$0xf]
        %v1512 = vld [vmem:[#allocation7 + $0x228] sm:$0xf]
        %v1513 = vld [vmem:[#allocation7 + $0x22c] sm:$0xf]
        %v1514 = vld [vmem:[#allocation7 + $0x230] sm:$0xf]
        %v1515 = vld [vmem:[#allocation7 + $0x234] sm:$0xf]
        %v1516 = vld [vmem:[#allocation7 + $0x238] sm:$0xf]
        %v1517 = vld [vmem:[#allocation7 + $0x23c] sm:$0xf]
        %v1518 = vld [vmem:[#allocation10 + $0x6] ss:$0 sm:$0xff]
        %v1583 = vunpack.c.l.b16 %v1454
        %v1584 = vunpack.c.l.b16 %v1455
        %v1585 = vunpack.c.l.b16 %v1456
        %v1586 = vunpack.c.l.b16 %v1457
        %v1587 = vunpack.c.l.b16 %v1458
        %v1588 = vunpack.c.l.b16 %v1459
        %v1589 = vunpack.c.l.b16 %v1460
        %v1590 = vunpack.c.l.b16 %v1461
        %v1591 = vunpack.c.l.b16 %v1462
        %v1592 = vunpack.c.l.b16 %v1463
        %v1593 = vunpack.c.l.b16 %v1464
        %v1594 = vunpack.c.l.b16 %v1465
        %v1595 = vunpack.c.l.b16 %v1466
        %v1596 = vunpack.c.l.b16 %v1467
        %v1597 = vunpack.c.l.b16 %v1468
        %v1598 = vunpack.c.l.b16 %v1469
        %v1599 = vunpack.c.l.b16 %v1470
        %v1600 = vunpack.c.l.b16 %v1471
        %v1601 = vunpack.c.l.b16 %v1472
        %v1602 = vunpack.c.l.b16 %v1473
        %v1603 = vunpack.c.l.b16 %v1474
        %v1604 = vunpack.c.l.b16 %v1475
        %v1605 = vunpack.c.l.b16 %v1476
        %v1606 = vunpack.c.l.b16 %v1477
        %v1607 = vunpack.c.l.b16 %v1478
        %v1608 = vunpack.c.l.b16 %v1479
        %v1609 = vunpack.c.l.b16 %v1480
        %v1610 = vunpack.c.l.b16 %v1481
        %v1611 = vunpack.c.l.b16 %v1482
        %v1612 = vunpack.c.l.b16 %v1483
        %v1613 = vunpack.c.l.b16 %v1484
        %v1614 = vunpack.c.l.b16 %v1485
        %v1615 = vunpack.c.l.b16 %v1486
        %v1616 = vunpack.c.l.b16 %v1487
        %v1617 = vunpack.c.l.b16 %v1488
        %v1618 = vunpack.c.l.b16 %v1489
        %v1619 = vunpack.c.l.b16 %v1490
        %v1620 = vunpack.c.l.b16 %v1491
        %v1621 = vunpack.c.l.b16 %v1492
        %v1622 = vunpack.c.l.b16 %v1493
        %v1623 = vunpack.c.l.b16 %v1494
        %v1624 = vunpack.c.l.b16 %v1495
        %v1625 = vunpack.c.l.b16 %v1496
        %v1626 = vunpack.c.l.b16 %v1497
        %v1627 = vunpack.c.l.b16 %v1498
        %v1628 = vunpack.c.l.b16 %v1499
        %v1629 = vunpack.c.l.b16 %v1500
        %v1630 = vunpack.c.l.b16 %v1501
        %v1631 = vunpack.c.l.b16 %v1502
        %v1632 = vunpack.c.l.b16 %v1503
        %v1633 = vunpack.c.l.b16 %v1504
        %v1634 = vunpack.c.l.b16 %v1505
        %v1635 = vunpack.c.l.b16 %v1506
        %v1636 = vunpack.c.l.b16 %v1507
        %v1637 = vunpack.c.l.b16 %v1508
        %v1638 = vunpack.c.l.b16 %v1509
        %v1639 = vunpack.c.l.b16 %v1510
        %v1640 = vunpack.c.l.b16 %v1511
        %v1641 = vunpack.c.l.b16 %v1512
        %v1642 = vunpack.c.l.b16 %v1513
        %v1643 = vunpack.c.l.b16 %v1514
        %v1644 = vunpack.c.l.b16 %v1515
        %v1645 = vunpack.c.l.b16 %v1516
        %v1646 = vunpack.c.l.b16 %v1517
        %v1647 = vpack.c.b16 %v1584, %v1583
        %v1648 = vpack.c.b16 %v1586, %v1585
        %v1649 = vpack.c.b16 %v1588, %v1587
        %v1650 = vpack.c.b16 %v1590, %v1589
        %v1651 = vpack.c.b16 %v1592, %v1591
        %v1652 = vpack.c.b16 %v1594, %v1593
        %v1653 = vpack.c.b16 %v1596, %v1595
        %v1654 = vpack.c.b16 %v1598, %v1597
        %v1655 = vpack.c.b16 %v1600, %v1599
        %v1656 = vpack.c.b16 %v1602, %v1601
        %v1657 = vpack.c.b16 %v1604, %v1603
        %v1658 = vpack.c.b16 %v1606, %v1605
        %v1659 = vpack.c.b16 %v1608, %v1607
        %v1660 = vpack.c.b16 %v1610, %v1609
        %v1661 = vpack.c.b16 %v1612, %v1611
        %v1662 = vpack.c.b16 %v1614, %v1613
        %v1663 = vpack.c.b16 %v1616, %v1615
        %v1664 = vpack.c.b16 %v1618, %v1617
        %v1665 = vpack.c.b16 %v1620, %v1619
        %v1666 = vpack.c.b16 %v1622, %v1621
        %v1667 = vpack.c.b16 %v1624, %v1623
        %v1668 = vpack.c.b16 %v1626, %v1625
        %v1669 = vpack.c.b16 %v1628, %v1627
        %v1670 = vpack.c.b16 %v1630, %v1629
        %v1671 = vpack.c.b16 %v1632, %v1631
        %v1672 = vpack.c.b16 %v1634, %v1633
        %v1673 = vpack.c.b16 %v1636, %v1635
        %v1674 = vpack.c.b16 %v1638, %v1637
        %v1675 = vpack.c.b16 %v1640, %v1639
        %v1676 = vpack.c.b16 %v1642, %v1641
        %v1677 = vpack.c.b16 %v1644, %v1643
        %v1678 = vpack.c.b16 %v1646, %v1645
        %1711 = vmatprep.subr.bf16.mxu0 0
        %1712 = vmatpush1.bf16.msra.mxu0 %v1654
        %1713 = vmatprep.subr.bf16.mxu0 0
        %1714 = vmatpush1.bf16.msra.mxu0 %v1653
        %1715 = vmatprep.subr.bf16.mxu0 0
        %1716 = vmatpush1.bf16.msra.mxu0 %v1652
        %1717 = vmatprep.subr.bf16.mxu0 0
        %1718 = vmatpush1.bf16.msra.mxu0 %v1651
        %1719 = vmatprep.subr.bf16.mxu0 0
        %1720 = vmatpush1.bf16.msra.mxu0 %v1650
        %1721 = vmatprep.subr.bf16.mxu0 0
        %1722 = vmatpush1.bf16.msra.mxu0 %v1649
        %1723 = vmatprep.subr.bf16.mxu0 0
        %1724 = vmatpush1.bf16.msra.mxu0 %v1648
        %1725 = vmatprep.subr.bf16.mxu0 0
        %1726 = vmatpush1.bf16.msra.mxu0 %v1647
        %1727 = vmatprep.subr.bf16.mxu0 0
        %1728 = vmatpush2.bf16.msra.mxu0 %v1662
        %1729 = vmatprep.subr.bf16.mxu0 0
        %1730 = vmatpush2.bf16.msra.mxu0 %v1661
        %1731 = vmatprep.subr.bf16.mxu0 0
        %1732 = vmatpush2.bf16.msra.mxu0 %v1660
        %1733 = vmatprep.subr.bf16.mxu0 0
        %1734 = vmatpush2.bf16.msra.mxu0 %v1659
        %1735 = vmatprep.subr.bf16.mxu0 0
        %1736 = vmatpush2.bf16.msra.mxu0 %v1658
        %1737 = vmatprep.subr.bf16.mxu0 0
        %1738 = vmatpush2.bf16.msra.mxu0 %v1657
        %1739 = vmatprep.subr.bf16.mxu0 0
        %1740 = vmatpush2.bf16.msra.mxu0 %v1656
        %1741 = vmatprep.subr.bf16.mxu0 0
        %1742 = vmatpush2.bf16.msra.mxu0 %v1655
        %1743 = vmatprep.mubr.bf16.mxu0 %v1451
        %1744 = vmatmul.mubr.bf16.gmra.mxu0 %v1450
        %v1745 = vpop.f32.mrf.mxu0
        %v1746 = vadd.f32 %v1518, %v1745
        %v1747 = vpop.f32.mrf.mxu0
        %v1748 = vpop.f32.mrf.mxu0
        %v1749 = vadd.f32 %v1518, %v1748
        %v1750 = vpop.f32.mrf.mxu0
        %1751 = vdwg.mxu0
        %1752 = vmatprep.subr.bf16.mxu0 0
        %1753 = vmatpush1.bf16.msra.mxu0 %v1670
        %1754 = vmatprep.subr.bf16.mxu0 0
        %1755 = vmatpush1.bf16.msra.mxu0 %v1669
        %1756 = vmatprep.subr.bf16.mxu0 0
        %1757 = vmatpush1.bf16.msra.mxu0 %v1668
        %1758 = vmatprep.subr.bf16.mxu0 0
        %1759 = vmatpush1.bf16.msra.mxu0 %v1667
        %1760 = vmatprep.subr.bf16.mxu0 0
        %1761 = vmatpush1.bf16.msra.mxu0 %v1666
        %1762 = vmatprep.subr.bf16.mxu0 0
        %1763 = vmatpush1.bf16.msra.mxu0 %v1665
        %1764 = vmatprep.subr.bf16.mxu0 0
        %1765 = vmatpush1.bf16.msra.mxu0 %v1664
        %1766 = vmatprep.subr.bf16.mxu0 0
        %1767 = vmatpush1.bf16.msra.mxu0 %v1663
        %1768 = vmatprep.subr.bf16.mxu0 0
        %1769 = vmatpush2.bf16.msra.mxu0 %v1678
        %1770 = vmatprep.subr.bf16.mxu0 0
        %1771 = vmatpush2.bf16.msra.mxu0 %v1677
        %1772 = vmatprep.subr.bf16.mxu0 0
        %1773 = vmatpush2.bf16.msra.mxu0 %v1676
        %1774 = vmatprep.subr.bf16.mxu0 0
        %1775 = vmatpush2.bf16.msra.mxu0 %v1675
        %1776 = vmatprep.subr.bf16.mxu0 0
        %1777 = vmatpush2.bf16.msra.mxu0 %v1674
        %1778 = vmatprep.subr.bf16.mxu0 0
        %1779 = vmatpush2.bf16.msra.mxu0 %v1673
        %1780 = vmatprep.subr.bf16.mxu0 0
        %1781 = vmatpush2.bf16.msra.mxu0 %v1672
        %1782 = vmatprep.subr.bf16.mxu0 0
        %1783 = vmatpush2.bf16.msra.mxu0 %v1671
        %1784 = vmatprep.mubr.bf16.mxu0 %v1453
        %1785 = vmatmul.mubr.bf16.gmra.mxu0 %v1452
        %v1786 = vpop.f32.mrf.mxu0
        %v1787 = vadd.f32 %v1746, %v1786
        %v1788 = vpop.f32.mrf.mxu0
        %v1789 = vpop.f32.mrf.mxu0
        %v1790 = vadd.f32 %v1749, %v1789
        %v1791 = vpop.f32.mrf.mxu0
        %1792 = vdwg.mxu0
        %v1793 = vmax.f32 %v1787, 0.0
        %v1794 = vmax.f32 %v1790, 0.0
        %v1795 = vld [vmem:[#allocation7 + $0x240] sm:$0xf]
        %v1796 = vld [vmem:[#allocation7 + $0x244] sm:$0xf]
        %v1797 = vld [vmem:[#allocation7 + $0x248] sm:$0xf]
        %v1798 = vld [vmem:[#allocation7 + $0x24c] sm:$0xf]
        %v1799 = vld [vmem:[#allocation7 + $0x250] sm:$0xf]
        %v1800 = vld [vmem:[#allocation7 + $0x254] sm:$0xf]
        %v1801 = vld [vmem:[#allocation7 + $0x258] sm:$0xf]
        %v1802 = vld [vmem:[#allocation7 + $0x25c] sm:$0xf]
        %v1803 = vld [vmem:[#allocation7 + $0x260] sm:$0xf]
        %v1804 = vld [vmem:[#allocation7 + $0x264] sm:$0xf]
        %v1805 = vld [vmem:[#allocation7 + $0x268] sm:$0xf]
        %v1806 = vld [vmem:[#allocation7 + $0x26c] sm:$0xf]
        %v1807 = vld [vmem:[#allocation7 + $0x270] sm:$0xf]
        %v1808 = vld [vmem:[#allocation7 + $0x274] sm:$0xf]
        %v1809 = vld [vmem:[#allocation7 + $0x278] sm:$0xf]
        %v1810 = vld [vmem:[#allocation7 + $0x27c] sm:$0xf]
        %v1811 = vpack.c.bf16 %v1794, %v1793
        %v1812 = vld [vmem:[#allocation10 + $0x7] ss:$0 sm:$0xff]
        %v1829 = vunpack.c.l.b16 %v1795
        %v1830 = vunpack.c.l.b16 %v1796
        %v1831 = vunpack.c.l.b16 %v1797
        %v1832 = vunpack.c.l.b16 %v1798
        %v1833 = vunpack.c.l.b16 %v1799
        %v1834 = vunpack.c.l.b16 %v1800
        %v1835 = vunpack.c.l.b16 %v1801
        %v1836 = vunpack.c.l.b16 %v1802
        %v1837 = vunpack.c.l.b16 %v1803
        %v1838 = vunpack.c.l.b16 %v1804
        %v1839 = vunpack.c.l.b16 %v1805
        %v1840 = vunpack.c.l.b16 %v1806
        %v1841 = vunpack.c.l.b16 %v1807
        %v1842 = vunpack.c.l.b16 %v1808
        %v1843 = vunpack.c.l.b16 %v1809
        %v1844 = vunpack.c.l.b16 %v1810
        %v1845 = vpack.c.b16 %v1830, %v1829
        %v1846 = vpack.c.b16 %v1832, %v1831
        %v1847 = vpack.c.b16 %v1834, %v1833
        %v1848 = vpack.c.b16 %v1836, %v1835
        %v1849 = vpack.c.b16 %v1838, %v1837
        %v1850 = vpack.c.b16 %v1840, %v1839
        %v1851 = vpack.c.b16 %v1842, %v1841
        %v1852 = vpack.c.b16 %v1844, %v1843
        %1861 = vmatprep.subr.bf16.mxu0 0
        %1862 = vmatpush1.bf16.msra.mxu0 %v1852
        %1863 = vmatprep.subr.bf16.mxu0 0
        %1864 = vmatpush1.bf16.msra.mxu0 %v1851
        %1865 = vmatprep.subr.bf16.mxu0 0
        %1866 = vmatpush1.bf16.msra.mxu0 %v1850
        %1867 = vmatprep.subr.bf16.mxu0 0
        %1868 = vmatpush1.bf16.msra.mxu0 %v1849
        %1869 = vmatprep.subr.bf16.mxu0 0
        %1870 = vmatpush1.bf16.msra.mxu0 %v1848
        %1871 = vmatprep.subr.bf16.mxu0 0
        %1872 = vmatpush1.bf16.msra.mxu0 %v1847
        %1873 = vmatprep.subr.bf16.mxu0 0
        %1874 = vmatpush1.bf16.msra.mxu0 %v1846
        %1875 = vmatprep.subr.bf16.mxu0 0
        %1876 = vmatpush1.bf16.msra.mxu0 %v1845
        %1877 = vmatprep.subr.bf16.mxu0 0
        %1878 = vmatpush2.bf16.msra.mxu0 0
        %1879 = vmatprep.subr.bf16.mxu0 0
        %1880 = vmatpush2.bf16.msra.mxu0 0
        %1881 = vmatprep.subr.bf16.mxu0 0
        %1882 = vmatpush2.bf16.msra.mxu0 0
        %1883 = vmatprep.subr.bf16.mxu0 0
        %1884 = vmatpush2.bf16.msra.mxu0 0
        %1885 = vmatprep.subr.bf16.mxu0 0
        %1886 = vmatpush2.bf16.msra.mxu0 0
        %1887 = vmatprep.subr.bf16.mxu0 0
        %1888 = vmatpush2.bf16.msra.mxu0 0
        %1889 = vmatprep.subr.bf16.mxu0 0
        %1890 = vmatpush2.bf16.msra.mxu0 0
        %1891 = vmatprep.subr.bf16.mxu0 0
        %1892 = vmatpush2.bf16.msra.mxu0 0
        %1893 = vmatprep.mubr.bf16.mxu0 0
        %1894 = vmatmul.mubr.bf16.gmra.mxu0 %v1811
        %v1895 = vpop.f32.mrf.mxu0
        %v1896 = vadd.f32 %v1812, %v1895
        %v1897 = vpop.f32.mrf.mxu0
        %v1898 = vpop.f32.mrf.mxu0
        %v1899 = vadd.f32 %v1812, %v1898
        %v1900 = vpop.f32.mrf.mxu0
        %1901 = vdwg.mxu0
        %v1902 = vmax.f32 %v1896, 0.0
        %v1903 = vmax.f32 %v1899, 0.0
        %v1904 = vld [vmem:[#allocation7 + $0x280] sm:$0xf]
        %v1905 = vld [vmem:[#allocation7 + $0x284] sm:$0xf]
        %v1906 = vld [vmem:[#allocation7 + $0x288] sm:$0xf]
        %v1907 = vld [vmem:[#allocation7 + $0x28c] sm:$0xf]
        %v1908 = vld [vmem:[#allocation7 + $0x290] sm:$0xf]
        %v1909 = vld [vmem:[#allocation7 + $0x294] sm:$0xf]
        %v1910 = vld [vmem:[#allocation7 + $0x298] sm:$0xf]
        %v1911 = vld [vmem:[#allocation7 + $0x29c] sm:$0xf]
        %v1912 = vld [vmem:[#allocation7 + $0x2a0] sm:$0xf]
        %v1913 = vld [vmem:[#allocation7 + $0x2a4] sm:$0xf]
        %v1914 = vld [vmem:[#allocation7 + $0x2a8] sm:$0xf]
        %v1915 = vld [vmem:[#allocation7 + $0x2ac] sm:$0xf]
        %v1916 = vld [vmem:[#allocation7 + $0x2b0] sm:$0xf]
        %v1917 = vld [vmem:[#allocation7 + $0x2b4] sm:$0xf]
        %v1918 = vld [vmem:[#allocation7 + $0x2b8] sm:$0xf]
        %v1919 = vld [vmem:[#allocation7 + $0x2bc] sm:$0xf]
        %v1920 = vpack.c.bf16 %v1903, %v1902
        %v1921 = vld [vmem:[#allocation10 + $0x10] ss:$0 sm:$0xff]
        %v1938 = vunpack.c.l.b16 %v1904
        %v1939 = vunpack.c.l.b16 %v1905
        %v1940 = vunpack.c.l.b16 %v1906
        %v1941 = vunpack.c.l.b16 %v1907
        %v1942 = vunpack.c.l.b16 %v1908
        %v1943 = vunpack.c.l.b16 %v1909
        %v1944 = vunpack.c.l.b16 %v1910
        %v1945 = vunpack.c.l.b16 %v1911
        %v1946 = vunpack.c.l.b16 %v1912
        %v1947 = vunpack.c.l.b16 %v1913
        %v1948 = vunpack.c.l.b16 %v1914
        %v1949 = vunpack.c.l.b16 %v1915
        %v1950 = vunpack.c.l.b16 %v1916
        %v1951 = vunpack.c.l.b16 %v1917
        %v1952 = vunpack.c.l.b16 %v1918
        %v1953 = vunpack.c.l.b16 %v1919
        %v1954 = vpack.c.b16 %v1939, %v1938
        %v1955 = vpack.c.b16 %v1941, %v1940
        %v1956 = vpack.c.b16 %v1943, %v1942
        %v1957 = vpack.c.b16 %v1945, %v1944
        %v1958 = vpack.c.b16 %v1947, %v1946
        %v1959 = vpack.c.b16 %v1949, %v1948
        %v1960 = vpack.c.b16 %v1951, %v1950
        %v1961 = vpack.c.b16 %v1953, %v1952
        %1970 = vmatprep.subr.bf16.mxu0 0
        %1971 = vmatpush1.bf16.msra.mxu0 %v1961
        %1972 = vmatprep.subr.bf16.mxu0 0
        %1973 = vmatpush1.bf16.msra.mxu0 %v1960
        %1974 = vmatprep.subr.bf16.mxu0 0
        %1975 = vmatpush1.bf16.msra.mxu0 %v1959
        %1976 = vmatprep.subr.bf16.mxu0 0
        %1977 = vmatpush1.bf16.msra.mxu0 %v1958
        %1978 = vmatprep.subr.bf16.mxu0 0
        %1979 = vmatpush1.bf16.msra.mxu0 %v1957
        %1980 = vmatprep.subr.bf16.mxu0 0
        %1981 = vmatpush1.bf16.msra.mxu0 %v1956
        %1982 = vmatprep.subr.bf16.mxu0 0
        %1983 = vmatpush1.bf16.msra.mxu0 %v1955
        %1984 = vmatprep.subr.bf16.mxu0 0
        %1985 = vmatpush1.bf16.msra.mxu0 %v1954
        %1986 = vmatprep.subr.bf16.mxu0 0
        %1987 = vmatpush2.bf16.msra.mxu0 0
        %1988 = vmatprep.subr.bf16.mxu0 0
        %1989 = vmatpush2.bf16.msra.mxu0 0
        %1990 = vmatprep.subr.bf16.mxu0 0
        %1991 = vmatpush2.bf16.msra.mxu0 0
        %1992 = vmatprep.subr.bf16.mxu0 0
        %1993 = vmatpush2.bf16.msra.mxu0 0
        %1994 = vmatprep.subr.bf16.mxu0 0
        %1995 = vmatpush2.bf16.msra.mxu0 0
        %1996 = vmatprep.subr.bf16.mxu0 0
        %1997 = vmatpush2.bf16.msra.mxu0 0
        %1998 = vmatprep.subr.bf16.mxu0 0
        %1999 = vmatpush2.bf16.msra.mxu0 0
        %2000 = vmatprep.subr.bf16.mxu0 0
        %2001 = vmatpush2.bf16.msra.mxu0 0
        %2002 = vmatprep.mubr.bf16.mxu0 0
        %2003 = vmatmul.mubr.bf16.gmra.mxu0 %v1920
        %v2004 = vpop.f32.mrf.mxu0
        %v2005 = vadd.f32 %v1921, %v2004
        %v2006 = vpop.f32.mrf.mxu0
        %v2007 = vpop.f32.mrf.mxu0
        %v2008 = vadd.f32 %v1921, %v2007
        %v2009 = vpop.f32.mrf.mxu0
        %2010 = vdwg.mxu0
        %2011 = vst [vmem:[%s438] sm:$0xff] %v2005
        %2012 = vst [vmem:[%s438 + $0x8] sm:$0xff] %v2008
        %s2013 = sand.u32 %s225, 1
        %s2014 = scalar_lea.sflag [#allocation4], %s2013
        %s2015 = sand.u32 %s225, 1
        %s2016 = smul.addr %s2015, 16
        %s2017 = scalar_lea.vmem [#allocation11], %s2016
        // Predicated region
        $region73: #{tpu_custom_call.1} parent=51 // pred_check
          %p2018 = pneg %p235
        $region74: #{tpu_custom_call.1} parent=51 // pred_check_branch
          %2020 = sbr.rel (%p2018) target = $region76
        $region75: #{tpu_custom_call.1} parent=51 // pred_region
          %s2021 = smul.u32 2, %s29
          %s2023 = ssub.s32 256, 256
          %2024 = vsyncadd %s2014, %s2023
          %s2025 = smul.addr %s2021, 128
          %s2026 = scalar_lea.hbm %s8, %s2025
          %s2027 = sshll.u32 %s2017, 4
          %s2028 = int_to_ptr.vmem [resolvable:$true] %s2027
          %2033 = dma.vmem_to_hbm [thread:$0]  %s2028, 256, %s2026, %s2014, 128, 128, 8
        $region76: #{tpu_custom_call.1} parent=51 // pred_fallthru
          _
      $region52: #{tpu_custom_call.1} parent=5 // pred_fallthru
        _
      %p2034 = scmp.le.s32.totalorder 2, %s24
      // Predicated region
      $region77: #{tpu_custom_call.1} parent=5 // pred_check
        %p2035 = pneg %p2034
      $region78: #{tpu_custom_call.1} parent=5 // pred_check_branch
        %2037 = sbr.rel (%p2035) target = $region80
      $region79: #{tpu_custom_call.1} parent=5 // pred_region
        %s2038 = ssub.s32 %s24, 2
        // Predicated region
        $region81: #{tpu_custom_call.1} parent=79 // pred_check
          %p2039 = pneg %p241
        $region82: #{tpu_custom_call.1} parent=79 // pred_check_branch
          %2041 = sbr.rel (%p2039) target = $region84
        $region83: #{tpu_custom_call.1} parent=79 // pred_region
          %s2042 = sand.u32 %s226, 1
          %s2043 = scalar_lea.sflag [#allocation4], %s2042
          %s2044 = sand.u32 %s226, 1
          %s2045 = smul.addr %s2044, 16
          %s2046 = scalar_lea.vmem [#allocation11], %s2045
          %2047 = dma.done %s2043, 256
        $region84: #{tpu_custom_call.1} parent=79 // pred_fallthru
          _
      $region80: #{tpu_custom_call.1} parent=5 // pred_fallthru
        _
    $region6: #{tpu_custom_call.1} parent=1 // loop_footer
      %s28 = sadd.s32 1, %s24
    $region7: #{tpu_custom_call.1} parent=1 // loop_footer_branch
      %23 = sbr.rel target = $region3
    $region8: #{tpu_custom_call.1} parent=1 // loop_exit
      _
    %2048 = vsyncpa [#allocation3], 1
    %s2049 = scalar_lea.sflag [#allocation3], 1
    %2050 = vsyncpa %s2049, 1
    %2051 = vsyncpa [#allocation6], 1
    %s2052 = scalar_lea.sflag [#allocation6], 1
    %2053 = vsyncpa %s2052, 1
    %2054 = vsyncpa [#allocation9], 1
    %2055 = vsyncpa [#allocation4], 1
    %s2056 = scalar_lea.sflag [#allocation4], 1
    %2057 = vsyncpa %s2056, 1

</llo_original>
